<compile_context>
chip_gen: v5e
topology: v5e:2x2
jax: 0.10.0
libtpu: 0.0.40
codegen_flags: <defaults>
</compile_context>

<pallas_src>
from math import exp
import re

import numpy as np
import jax
import jax.numpy as jnp
from jax import lax
from jax.experimental import pallas as pl
from jax.experimental.pallas import tpu as pltpu


_C1 = 0.01 ** 2
_C2 = 0.03 ** 2
# Mosaic's dot_general lowering supports DEFAULT / HIGHEST only; HIGH would fail
# to lower, and DEFAULT (1-pass bf16) risks exceeding tolerance via the
# sigma = E[x^2] - mu^2 cancellation.  Keep HIGHEST (matches f64 ref to ~1e-6).
_MATMUL_PRECISION = lax.Precision.HIGHEST


def _gaussian_1d(window_size: int, sigma: float = 1.5) -> np.ndarray:
    """1D Gaussian window, identical to the reference `gaussian()` (normalized)."""
    g = np.array(
        [exp(-((x - window_size // 2) ** 2) / float(2 * sigma ** 2))
         for x in range(window_size)],
        dtype=np.float64,
    )
    return g / g.sum()


def _band_operator(n: int, g: np.ndarray, pad: int) -> np.ndarray:
    """Banded Toeplitz operator for the zero-padded Gaussian correlation along
    the lane axis:  (X @ op)[r, k] = sum_w X[r, w] * g[w - k + pad]."""
    op = np.zeros((n, n), dtype=np.float64)
    for k in range(n):
        for w in range(max(0, k - pad), min(n, k + pad + 1)):
            op[w, k] = g[w - k + pad]
    return op


def _tpu_generation():
    """Best-effort TPU generation (5, 6, 7, ...) from device_kind; None if unknown."""
    try:
        kind = jax.devices()[0].device_kind
    except Exception:
        return None
    m = re.search(r"(\d+)", kind)
    return int(m.group(1)) if m else None


def _pick_lane_pack(BC: int, W: int, target_lanes: int) -> int:
    """Pack k channels side-by-side on the lane axis so blocks are lane-dense
    (>=128 wide when possible).  k must divide B*C."""
    if W >= 128:
        return 1
    best = 1
    for k in range(1, BC + 1):
        if BC % k == 0 and k * W <= target_lanes:
            best = k
    return best


def _pick_group_tile(G: int, H: int, KW: int, vmem_limit: int,
                     want_two_cores: bool) -> int:
    """Largest group tile TG (divisor of G) whose (TG, H, KW) f32 block fits the
    per-block budget (~32 live block-sized slabs incl. double-buffered I/O).
    On 2-TensorCore chips (v7x) prefer an even number of grid steps."""
    block_budget = max(vmem_limit // 32, 64 * 1024)
    cands = [t for t in range(1, G + 1)
             if G % t == 0 and t * H * KW * 4 <= block_budget]
    if not cands:
        # TODO(synk): huge images need banded column/row strip tiling instead of
        # whole-image blocks; fall back to one group per step.
        return 1
    if want_two_cores:
        even = [t for t in cands if (G // t) % 2 == 0]
        if even:
            return max(even)
        multi = [t for t in cands if G // t >= 2]
        if multi:
            return max(multi)
    return max(cands)


# ---------------------------------------------------------------------------
# Kernel.  Per grid step, one (TG, H, KW) block = TG groups of k lane-packed
# channels.
#   bw_ref : (KW, KW)  block-diag(I_k (x) Bw):  X @ bw = zero-padded horiz blur
#   bh_ref : (H, H)    Bh:  bh @ X = zero-padded vertical blur (per channel)
#   x1_ref, x2_ref : (TG, H, KW) lane-packed image blocks
#   out_ref        : (TG, H, KW) SSIM map block
# ---------------------------------------------------------------------------
def _ssim_kernel(bw_ref, bh_ref, x1_ref, x2_ref, out_ref):
    f32 = jnp.float32
    prec = _MATMUL_PRECISION
    TG, H, KW = x1_ref.shape

    a = x1_ref[...].astype(f32).reshape(TG * H, KW)
    b = x2_ref[...].astype(f32).reshape(TG * H, KW)

    # Fused blurs: one horizontal MXU matmul over the stacked (5*TG*H, KW) slab,
    # then one batched vertical matmul with the small (H, H) operator.
    stacked = jnp.concatenate([a, b, a * a, b * b, a * b], axis=0)
    hblur = jnp.dot(stacked, bw_ref[...],
                    preferred_element_type=f32, precision=prec)
    bh_b = jnp.broadcast_to(bh_ref[...], (5 * TG, H, H))
    blur = jnp.einsum("gij,gjw->giw", bh_b, hblur.reshape(5 * TG, H, KW),
                      preferred_element_type=f32, precision=prec)

    mu1 = blur[0 * TG:1 * TG]
    mu2 = blur[1 * TG:2 * TG]
    e11 = blur[2 * TG:3 * TG]
    e22 = blur[3 * TG:4 * TG]
    e12 = blur[4 * TG:5 * TG]

    # Epilogue with a small live set: fold the sigma terms straight into num/den.
    mu1_mu2 = mu1 * mu2
    num = (2.0 * mu1_mu2 + _C1) * (2.0 * (e12 - mu1_mu2) + _C2)
    mu_sq = mu1 * mu1 + mu2 * mu2
    den = (mu_sq + _C1) * ((e11 + e22 - mu_sq) + _C2)
    out_ref[...] = (num / den).astype(out_ref.dtype)


def ssim_pallas(img1: jax.Array, img2: jax.Array, window_size: int = 11) -> jax.Array:
    """SSIM map for NCHW inputs, matching the PyTorch SSIM module's forward."""
    assert img1.shape == img2.shape and img1.ndim == 4
    B, C, H, W = img1.shape
    BC = B * C
    pad = window_size // 2
    g = _gaussian_1d(window_size)

    gen = _tpu_generation()
    if gen is not None and gen >= 7:          # v7x: 64 MiB VMEM/TC, 2 TCs/chip
        vmem_limit = 28 * 1024 * 1024
        want_two_cores = True
        target_lanes = 256
    elif gen == 6:                            # v6e: 128 MiB VMEM, 256-wide MXU
        vmem_limit = 64 * 1024 * 1024
        want_two_cores = False
        target_lanes = 256
    elif gen is not None:                     # v5e and older: 128-wide MXU
        vmem_limit = 64 * 1024 * 1024
        want_two_cores = False
        target_lanes = 128
    else:                                     # unknown: conservative defaults
        vmem_limit = 32 * 1024 * 1024
        want_two_cores = False
        target_lanes = 128

    kpack = _pick_lane_pack(BC, W, target_lanes)
    G = BC // kpack
    KW = kpack * W

    # Banded blur operators (zero padding baked in).
    bw1 = _band_operator(W, g, pad)                           # lane-axis blur
    bw = np.kron(np.eye(kpack, dtype=np.float64), bw1)        # (KW, KW)
    bh = _band_operator(H, g, pad).T                          # (H, H) row blur

    TG = _pick_group_tile(G, H, KW, vmem_limit, want_two_cores)

    # Lane-pack kpack channels side by side (pure layout plumbing in the wrapper).
    def pack(x):
        return x.reshape(G, kpack, H, W).transpose(0, 2, 1, 3).reshape(G, H, KW)

    x1 = pack(img1)
    x2 = pack(img2)

    out = pl.pallas_call(
        _ssim_kernel,
        out_shape=jax.ShapeDtypeStruct((G, H, KW), img1.dtype),
        grid=(G // TG,),
        in_specs=[
            pl.BlockSpec((KW, KW), lambda i: (0, 0)),        # VMEM-resident op
            pl.BlockSpec((H, H), lambda i: (0, 0)),          # VMEM-resident op
            pl.BlockSpec((TG, H, KW), lambda i: (i, 0, 0)),
            pl.BlockSpec((TG, H, KW), lambda i: (i, 0, 0)),
        ],
        out_specs=pl.BlockSpec((TG, H, KW), lambda i: (i, 0, 0)),
        compiler_params=pltpu.CompilerParams(
            dimension_semantics=("parallel",),
            vmem_limit_bytes=vmem_limit,
        ),
    )(jnp.asarray(bw, jnp.float32), jnp.asarray(bh, jnp.float32), x1, x2)

    # Undo the lane packing.
    return out.reshape(G, H, kpack, W).transpose(0, 2, 1, 3).reshape(B, C, H, W)


# ---------------------------------------------------------------------------
# Host-side float64 reference (direct 121-tap depthwise conv) for validation.
# ---------------------------------------------------------------------------
def _ssim_reference_np(img1, img2, window_size=11):
    B, C, H, W = img1.shape
    K = window_size
    pad = K // 2
    g = _gaussian_1d(K)
    w2d = np.outer(g, g)
    x1 = np.asarray(img1, dtype=np.float64)
    x2 = np.asarray(img2, dtype=np.float64)

    def conv(x):
        xp = np.pad(x, ((0, 0), (0, 0), (pad, pad), (pad, pad)))
        out = np.zeros((B, C, H, W), dtype=np.float64)
        for di in range(K):
            for dj in range(K):
                out += w2d[di, dj] * xp[:, :, di:di + H, dj:dj + W]
        return out

    mu1, mu2 = conv(x1), conv(x2)
    mu1_sq, mu2_sq, mu1_mu2 = mu1 * mu1, mu2 * mu2, mu1 * mu2
    sigma1_sq = conv(x1 * x1) - mu1_sq
    sigma2_sq = conv(x2 * x2) - mu2_sq
    sigma12 = conv(x1 * x2) - mu1_mu2
    return ((2 * mu1_mu2 + _C1) * (2 * sigma12 + _C2) /
            ((mu1_sq + mu2_sq + _C1) * (sigma1_sq + sigma2_sq + _C2)))


if __name__ == "__main__":
    key = jax.random.PRNGKey(0)
    k1, k2 = jax.random.split(key)
    B, C, H, W = 2, 4, 16, 16
    img1 = jax.random.uniform(k1, (B, C, H, W), dtype=jnp.float32)
    img2 = jax.random.uniform(k2, (B, C, H, W), dtype=jnp.float32)

    out = jax.block_until_ready(ssim_pallas(img1, img2, window_size=11))
    assert out.shape == (B, C, H, W)

    ref = _ssim_reference_np(np.asarray(img1), np.asarray(img2), window_size=11)
    err = float(np.max(np.abs(np.asarray(out, dtype=np.float64) - ref)))
    assert err < 5e-4, f"max abs error vs float64 reference: {err}"
    print("KERNEL_OK")
</pallas_src>

<mosaic_0001>
module attributes {stable_mosaic.version = 11 : i64} {
  func.func @_ssim_kernel(%arg0: i32, %arg1: memref<128x128xf32, #tpu.memory_space<vmem>>, %arg2: memref<16x16xf32, #tpu.memory_space<vmem>>, %arg3: memref<1x16x128xf32, #tpu.memory_space<vmem>>, %arg4: memref<1x16x128xf32, #tpu.memory_space<vmem>>, %arg5: memref<1x16x128xf32, #tpu.memory_space<vmem>>) attributes {dimension_semantics = [#tpu.dimension_semantics<parallel>], iteration_bounds = array<i64: 1>, scalar_prefetch = 0 : i64, scratch_operands = 0 : i64, tpu.core_type = #tpu.core_type<tc>, window_params = [{pipeline_mode = #tpu.pipeline_mode<synchronous>, transform_indices = @transform_0, window_bounds = array<i64: 128, 128>}, {pipeline_mode = #tpu.pipeline_mode<synchronous>, transform_indices = @transform_1, window_bounds = array<i64: 16, 16>}, {transform_indices = @transform_2, window_bounds = array<i64: 1, 16, 128>}, {transform_indices = @transform_3, window_bounds = array<i64: 1, 16, 128>}, {transform_indices = @transform_4, window_bounds = array<i64: 1, 16, 128>}]} {
    %c0 = arith.constant 0 : index
    %c0_0 = arith.constant 0 : index
    %c0_1 = arith.constant 0 : index
    %0 = vector.load %arg3[%c0, %c0_0, %c0_1] : memref<1x16x128xf32, #tpu.memory_space<vmem>>, vector<1x16x128xf32>
    %1 = vector.shape_cast %0 : vector<1x16x128xf32> to vector<16x128xf32>
    %c0_2 = arith.constant 0 : index
    %c0_3 = arith.constant 0 : index
    %c0_4 = arith.constant 0 : index
    %2 = vector.load %arg4[%c0_2, %c0_3, %c0_4] : memref<1x16x128xf32, #tpu.memory_space<vmem>>, vector<1x16x128xf32>
    %3 = vector.shape_cast %2 : vector<1x16x128xf32> to vector<16x128xf32>
    %4 = arith.mulf %1, %1 : vector<16x128xf32>
    %5 = arith.mulf %3, %3 : vector<16x128xf32>
    %6 = arith.mulf %1, %3 : vector<16x128xf32>
    %7 = tpu.concatenate %1, %3, %4, %5, %6 in 0 : vector<16x128xf32>, vector<16x128xf32>, vector<16x128xf32>, vector<16x128xf32>, vector<16x128xf32> -> vector<80x128xf32>
    %c0_5 = arith.constant 0 : index
    %c0_6 = arith.constant 0 : index
    %8 = vector.load %arg1[%c0_5, %c0_6] : memref<128x128xf32, #tpu.memory_space<vmem>>, vector<128x128xf32>
    %cst = arith.constant dense<0.000000e+00> : vector<80x128xf32>
    %9 = tpu.matmul %7, %8, %cst {dimension_numbers = #tpu.dot_dimension_numbers<[1], [0], [0], [1], [0, 0, 1, 1], [], []>, precision = #tpu.contract_precision<fp32>} : vector<80x128xf32>, vector<128x128xf32>, vector<80x128xf32> -> vector<80x128xf32>
    %c0_7 = arith.constant 0 : index
    %c0_8 = arith.constant 0 : index
    %10 = vector.load %arg2[%c0_7, %c0_8] : memref<16x16xf32, #tpu.memory_space<vmem>>, vector<16x16xf32>
    %11 = vector.shape_cast %10 : vector<16x16xf32> to vector<1x16x16xf32>
    %12 = vector.broadcast %11 : vector<1x16x16xf32> to vector<5x16x16xf32>
    %13 = vector.shape_cast %9 : vector<80x128xf32> to vector<5x16x128xf32>
    "tpu.trace_start"() <{level = 10 : i32, message = "gij,gjw->giw"}> : () -> ()
    %cst_9 = arith.constant dense<0.000000e+00> : vector<5x16x128xf32>
    %14 = tpu.matmul %12, %13, %cst_9 {dimension_numbers = #tpu.dot_dimension_numbers<[2], [1], [1], [2], [0, 0, 0, 1, 1, 2], [0], [0]>, precision = #tpu.contract_precision<fp32>} : vector<5x16x16xf32>, vector<5x16x128xf32>, vector<5x16x128xf32> -> vector<5x16x128xf32>
    "tpu.trace_stop"() : () -> ()
    %15 = vector.extract_strided_slice %14 {offsets = [0, 0, 0], sizes = [1, 16, 128], strides = [1, 1, 1]} : vector<5x16x128xf32> to vector<1x16x128xf32>
    %16 = vector.extract_strided_slice %14 {offsets = [1, 0, 0], sizes = [1, 16, 128], strides = [1, 1, 1]} : vector<5x16x128xf32> to vector<1x16x128xf32>
    %17 = vector.extract_strided_slice %14 {offsets = [2, 0, 0], sizes = [1, 16, 128], strides = [1, 1, 1]} : vector<5x16x128xf32> to vector<1x16x128xf32>
    %18 = vector.extract_strided_slice %14 {offsets = [3, 0, 0], sizes = [1, 16, 128], strides = [1, 1, 1]} : vector<5x16x128xf32> to vector<1x16x128xf32>
    %19 = vector.extract_strided_slice %14 {offsets = [4, 0, 0], sizes = [1, 16, 128], strides = [1, 1, 1]} : vector<5x16x128xf32> to vector<1x16x128xf32>
    %20 = arith.mulf %15, %16 : vector<1x16x128xf32>
    %cst_10 = arith.constant 2.000000e+00 : f32
    %21 = vector.broadcast %cst_10 : f32 to vector<1x16x128xf32>
    %22 = arith.mulf %21, %20 : vector<1x16x128xf32>
    %cst_11 = arith.constant 9.99999974E-5 : f32
    %23 = vector.broadcast %cst_11 : f32 to vector<1x16x128xf32>
    %24 = arith.addf %22, %23 : vector<1x16x128xf32>
    %25 = arith.subf %19, %20 : vector<1x16x128xf32>
    %cst_12 = arith.constant 2.000000e+00 : f32
    %26 = vector.broadcast %cst_12 : f32 to vector<1x16x128xf32>
    %27 = arith.mulf %26, %25 : vector<1x16x128xf32>
    %cst_13 = arith.constant 8.99999984E-4 : f32
    %28 = vector.broadcast %cst_13 : f32 to vector<1x16x128xf32>
    %29 = arith.addf %27, %28 : vector<1x16x128xf32>
    %30 = arith.mulf %24, %29 : vector<1x16x128xf32>
    %31 = arith.mulf %15, %15 : vector<1x16x128xf32>
    %32 = arith.mulf %16, %16 : vector<1x16x128xf32>
    %33 = arith.addf %31, %32 : vector<1x16x128xf32>
    %cst_14 = arith.constant 9.99999974E-5 : f32
    %34 = vector.broadcast %cst_14 : f32 to vector<1x16x128xf32>
    %35 = arith.addf %33, %34 : vector<1x16x128xf32>
    %36 = arith.addf %17, %18 : vector<1x16x128xf32>
    %37 = arith.subf %36, %33 : vector<1x16x128xf32>
    %cst_15 = arith.constant 8.99999984E-4 : f32
    %38 = vector.broadcast %cst_15 : f32 to vector<1x16x128xf32>
    %39 = arith.addf %37, %38 : vector<1x16x128xf32>
    %40 = arith.mulf %35, %39 : vector<1x16x128xf32>
    %41 = arith.divf %30, %40 : vector<1x16x128xf32>
    %c0_16 = arith.constant 0 : index
    %c0_17 = arith.constant 0 : index
    %c0_18 = arith.constant 0 : index
    %42 = vector.load %arg5[%c0_16, %c0_17, %c0_18] : memref<1x16x128xf32, #tpu.memory_space<vmem>>, vector<1x16x128xf32>
    tpu.vector_store %arg5[%c0_16, %c0_17, %c0_18], %41 {strides = array<i32>} : memref<1x16x128xf32, #tpu.memory_space<vmem>>, vector<1x16x128xf32>,
    return
  }
  func.func @transform_0(%arg0: i32) -> (i32, i32) {
    %c0_i32 = arith.constant 0 : i32
    %c0_i32_0 = arith.constant 0 : i32
    %c0_i32_1 = arith.constant 0 : i32
    return %c0_i32, %c0_i32_0 : i32, i32
  }
  func.func @transform_1(%arg0: i32) -> (i32, i32) {
    %c0_i32 = arith.constant 0 : i32
    %c0_i32_0 = arith.constant 0 : i32
    %c0_i32_1 = arith.constant 0 : i32
    return %c0_i32, %c0_i32_0 : i32, i32
  }
  func.func @transform_2(%arg0: i32) -> (i32, i32, i32) {
    %c0_i32 = arith.constant 0 : i32
    %c0_i32_0 = arith.constant 0 : i32
    %c0_i32_1 = arith.constant 0 : i32
    return %arg0, %c0_i32, %c0_i32_0 : i32, i32, i32
  }
  func.func @transform_3(%arg0: i32) -> (i32, i32, i32) {
    %c0_i32 = arith.constant 0 : i32
    %c0_i32_0 = arith.constant 0 : i32
    %c0_i32_1 = arith.constant 0 : i32
    return %arg0, %c0_i32, %c0_i32_0 : i32, i32, i32
  }
  func.func @transform_4(%arg0: i32) -> (i32, i32, i32) {
    %c0_i32 = arith.constant 0 : i32
    %c0_i32_0 = arith.constant 0 : i32
    %c0_i32_1 = arith.constant 0 : i32
    return %arg0, %c0_i32, %c0_i32_0 : i32, i32, i32
  }
}

</mosaic_0001>

<llo_original>
// kernel: tpu_custom_call.1
$region0: #{tpu_custom_call.1}
  #allocation0 [shape = 'u32[]', space=smem, size = 0x4, offset = 0x4, fixed_abs, tag = 'smem constant byte address 0x4 - core index']
  #allocation1 [shape = 'u32[72,128]{1,0:T(1,128)}', space=vmem, size = 0x9000, scoped, tag = 'internal scratch']
  %s0 = inlined_call_operand.hbm [shape: f32[128,128], index: 0, kind: input, shape index: {}]
  %s1 = inlined_call_operand.hbm [shape: f32[16,16], index: 1, kind: input, shape index: {}]
  %s2 = inlined_call_operand.hbm [shape: f32[1,16,128], index: 2, kind: input, shape index: {}]
  %s3 = inlined_call_operand.hbm [shape: f32[1,16,128], index: 3, kind: input, shape index: {}]
  %s4 = inlined_call_operand.hbm [shape: f32[1,16,128], index: 4, kind: output, shape index: {}]
  %s5 = sld [smem:[#allocation0]]
  $region42: #{tpu_custom_call.1} parent=0
    _
  %s7 = ssub.s32 1, %s5
  %s8 = scalar_select 0, %s7, %s5
  $region1: #{tpu_custom_call.1} parent=0
    #allocation2 [shape = 'u8[65536]{0}', space=vmem, size = 0x10000, scoped, tag = 'input window, operand 0, single buffered']
    #allocation3 [shape = 's32[1]{0}', space=sflag, size = 0x4, scoped, tag = 'scoped memory for tpu_custom_call.1']
    #allocation4 [shape = 's32[1]{0}', space=sflag, size = 0x4, scoped, tag = 'scoped memory for tpu_custom_call.1']
    #allocation5 [shape = 'u8[8192]{0}', space=vmem, size = 0x2000, scoped, tag = 'input window, operand 1, single buffered']
    #allocation6 [shape = 's32[1]{0}', space=sflag, size = 0x4, scoped, tag = 'scoped memory for tpu_custom_call.1']
    #allocation7 [shape = 'u8[8192]{0}', space=vmem, size = 0x2000, scoped, tag = 'input window, operand 2, single buffered']
    #allocation8 [shape = 'u8[8192]{0}', space=vmem, size = 0x2000, scoped, tag = 'input window, operand 3, single buffered']
    #allocation9 [shape = 's32[1]{0}', space=sflag, size = 0x4, scoped, tag = 'scoped memory for tpu_custom_call.1']
    #allocation10 [shape = 'u8[8192]{0}', space=vmem, size = 0x2000, scoped, tag = 'output window, operand 0, single buffered']
    %9 = vsyncpa [#allocation3], 0
    %10 = vsyncpa [#allocation6], 0
    %11 = vsyncpa [#allocation9], 0
    %12 = vsyncpa [#allocation4], 0
    // Predicated region
    $region2: #{tpu_custom_call.1} parent=1 // pred_check
      _
    $region3: #{tpu_custom_call.1} parent=1 // pred_check_branch
      %14 = sbr.rel (0) target = $region5
    $region4: #{tpu_custom_call.1} parent=1 // pred_region
      %16 = vsyncadd [#allocation3], 0
      %s17 = sshll.u32 %s0, 4
      %s18 = int_to_ptr.hbm [resolvable:$true] %s17
      %s19 = sshll.u32 [#allocation2], 4
      %s20 = int_to_ptr.vmem [resolvable:$true] %s19
      %25 = dma.hbm_to_vmem [thread:$0]  %s18, 2048, %s20, [#allocation3], 128, 128, 8
    $region5: #{tpu_custom_call.1} parent=1 // pred_fallthru
      _
    // Predicated region
    $region6: #{tpu_custom_call.1} parent=1 // pred_check
      _
    $region7: #{tpu_custom_call.1} parent=1 // pred_check_branch
      %27 = sbr.rel (0) target = $region9
    $region8: #{tpu_custom_call.1} parent=1 // pred_region
      %29 = vsyncadd [#allocation6], 0
      %s30 = sshll.u32 %s1, 4
      %s31 = int_to_ptr.hbm [resolvable:$true] %s30
      %s32 = sshll.u32 [#allocation5], 4
      %s33 = int_to_ptr.vmem [resolvable:$true] %s32
      %38 = dma.hbm_to_vmem [thread:$0]  %s31, 256, %s33, [#allocation6], 128, 128, 8
    $region9: #{tpu_custom_call.1} parent=1 // pred_fallthru
      _
    // Predicated region
    $region10: #{tpu_custom_call.1} parent=1 // pred_check
      _
    $region11: #{tpu_custom_call.1} parent=1 // pred_check_branch
      %40 = sbr.rel (0) target = $region13
    $region12: #{tpu_custom_call.1} parent=1 // pred_region
      %42 = vsyncadd [#allocation6], 0
      %s43 = sshll.u32 %s2, 4
      %s44 = int_to_ptr.hbm [resolvable:$true] %s43
      %s45 = sshll.u32 [#allocation7], 4
      %s46 = int_to_ptr.vmem [resolvable:$true] %s45
      %51 = dma.hbm_to_vmem [thread:$0]  %s44, 256, %s46, [#allocation6], 128, 128, 8
    $region13: #{tpu_custom_call.1} parent=1 // pred_fallthru
      _
    // Predicated region
    $region14: #{tpu_custom_call.1} parent=1 // pred_check
      _
    $region15: #{tpu_custom_call.1} parent=1 // pred_check_branch
      %53 = sbr.rel (0) target = $region17
    $region16: #{tpu_custom_call.1} parent=1 // pred_region
      %55 = vsyncadd [#allocation9], 0
      %s56 = sshll.u32 %s3, 4
      %s57 = int_to_ptr.hbm [resolvable:$true] %s56
      %s58 = sshll.u32 [#allocation8], 4
      %s59 = int_to_ptr.vmem [resolvable:$true] %s58
      %64 = dma.hbm_to_vmem [thread:$0]  %s57, 256, %s59, [#allocation9], 128, 128, 8
    $region17: #{tpu_custom_call.1} parent=1 // pred_fallthru
      _
    // Predicated region
    $region18: #{tpu_custom_call.1} parent=1 // pred_check
      _
    $region19: #{tpu_custom_call.1} parent=1 // pred_check_branch
      %66 = sbr.rel (0) target = $region21
    $region20: #{tpu_custom_call.1} parent=1 // pred_region
      %68 = dma.done [#allocation3], 2048
    $region21: #{tpu_custom_call.1} parent=1 // pred_fallthru
      _
    // Predicated region
    $region22: #{tpu_custom_call.1} parent=1 // pred_check
      _
    $region23: #{tpu_custom_call.1} parent=1 // pred_check_branch
      %70 = sbr.rel (0) target = $region25
    $region24: #{tpu_custom_call.1} parent=1 // pred_region
      %72 = dma.done [#allocation6], 256
    $region25: #{tpu_custom_call.1} parent=1 // pred_fallthru
      _
    // Predicated region
    $region26: #{tpu_custom_call.1} parent=1 // pred_check
      _
    $region27: #{tpu_custom_call.1} parent=1 // pred_check_branch
      %74 = sbr.rel (0) target = $region29
    $region28: #{tpu_custom_call.1} parent=1 // pred_region
      %76 = dma.done [#allocation6], 256
    $region29: #{tpu_custom_call.1} parent=1 // pred_fallthru
      _
    // Predicated region
    $region30: #{tpu_custom_call.1} parent=1 // pred_check
      _
    $region31: #{tpu_custom_call.1} parent=1 // pred_check_branch
      %78 = sbr.rel (0) target = $region33
    $region32: #{tpu_custom_call.1} parent=1 // pred_region
      %80 = dma.done [#allocation9], 256
    $region33: #{tpu_custom_call.1} parent=1 // pred_fallthru
      _
    %v81 = vld [vmem:[#allocation7] sm:$0xff]
    %v82 = vld [vmem:[#allocation7 + $0x8] sm:$0xff]
    %v83 = vld [vmem:[#allocation8] sm:$0xff]
    %v84 = vld [vmem:[#allocation8 + $0x8] sm:$0xff]
    %v85 = vmul.f32 %v81, %v81
    %v86 = vmul.f32 %v82, %v82
    %v87 = vmul.f32 %v83, %v83
    %v88 = vmul.f32 %v84, %v84
    %v89 = vmul.f32 %v81, %v83
    %v90 = vmul.f32 %v82, %v84
    %v91 = vld [vmem:[#allocation2] sm:$0xff]
    %v92 = vld [vmem:[#allocation2 + $0x8] sm:$0xff]
    %v93 = vld [vmem:[#allocation2 + $0x10] sm:$0xff]
    %v94 = vld [vmem:[#allocation2 + $0x18] sm:$0xff]
    %v95 = vld [vmem:[#allocation2 + $0x20] sm:$0xff]
    %v96 = vld [vmem:[#allocation2 + $0x28] sm:$0xff]
    %v97 = vld [vmem:[#allocation2 + $0x30] sm:$0xff]
    %v98 = vld [vmem:[#allocation2 + $0x38] sm:$0xff]
    %v99 = vld [vmem:[#allocation2 + $0x40] sm:$0xff]
    %v100 = vld [vmem:[#allocation2 + $0x48] sm:$0xff]
    %v101 = vld [vmem:[#allocation2 + $0x50] sm:$0xff]
    %v102 = vld [vmem:[#allocation2 + $0x58] sm:$0xff]
    %v103 = vld [vmem:[#allocation2 + $0x60] sm:$0xff]
    %v104 = vld [vmem:[#allocation2 + $0x68] sm:$0xff]
    %v105 = vld [vmem:[#allocation2 + $0x70] sm:$0xff]
    %v106 = vld [vmem:[#allocation2 + $0x78] sm:$0xff]
    %v107 = vand.u32 %v106, 4294901760
    %108 = vmatpush.msra.mxu0 %v107
    %v109 = vand.u32 %v105, 4294901760
    %110 = vmatpush.msra.mxu0 %v109
    %v111 = vand.u32 %v104, 4294901760
    %112 = vmatpush.msra.mxu0 %v111
    %v113 = vand.u32 %v103, 4294901760
    %114 = vmatpush.msra.mxu0 %v113
    %v115 = vand.u32 %v102, 4294901760
    %116 = vmatpush.msra.mxu0 %v115
    %v117 = vand.u32 %v101, 4294901760
    %118 = vmatpush.msra.mxu0 %v117
    %v119 = vand.u32 %v100, 4294901760
    %120 = vmatpush.msra.mxu0 %v119
    %v121 = vand.u32 %v99, 4294901760
    %122 = vmatpush.msra.mxu0 %v121
    %v123 = vand.u32 %v98, 4294901760
    %124 = vmatpush.msra.mxu0 %v123
    %v125 = vand.u32 %v97, 4294901760
    %126 = vmatpush.msra.mxu0 %v125
    %v127 = vand.u32 %v96, 4294901760
    %128 = vmatpush.msra.mxu0 %v127
    %v129 = vand.u32 %v95, 4294901760
    %130 = vmatpush.msra.mxu0 %v129
    %v131 = vand.u32 %v94, 4294901760
    %132 = vmatpush.msra.mxu0 %v131
    %v133 = vand.u32 %v93, 4294901760
    %134 = vmatpush.msra.mxu0 %v133
    %v135 = vand.u32 %v92, 4294901760
    %136 = vmatpush.msra.mxu0 %v135
    %v137 = vand.u32 %v91, 4294901760
    %138 = vmatpush.msra.mxu0 %v137
    %v139 = vand.u32 %v81, 4294901760
    %v140 = vsub.f32 %v81, %v139
    %v141 = vand.u32 %v140, 4294901760
    %v142 = vsub.f32 %v140, %v141
    %v143 = vand.u32 %v142, 4294901760
    %144 = vmatmul.f32.gmra.mxu0 %v143
    %v145 = vpop.f32.mrf.mxu0
    %v146 = vadd.f32 0.0, %v145
    %v147 = vand.u32 %v82, 4294901760
    %v148 = vsub.f32 %v82, %v147
    %v149 = vand.u32 %v148, 4294901760
    %v150 = vsub.f32 %v148, %v149
    %v151 = vand.u32 %v150, 4294901760
    %152 = vmatmul.f32.gmra.mxu0 %v151
    %v153 = vpop.f32.mrf.mxu0
    %v154 = vadd.f32 0.0, %v153
    %v155 = vand.u32 %v83, 4294901760
    %v156 = vsub.f32 %v83, %v155
    %v157 = vand.u32 %v156, 4294901760
    %v158 = vsub.f32 %v156, %v157
    %v159 = vand.u32 %v158, 4294901760
    %160 = vmatmul.f32.gmra.mxu0 %v159
    %v161 = vpop.f32.mrf.mxu0
    %v162 = vadd.f32 0.0, %v161
    %v163 = vand.u32 %v84, 4294901760
    %v164 = vsub.f32 %v84, %v163
    %v165 = vand.u32 %v164, 4294901760
    %v166 = vsub.f32 %v164, %v165
    %v167 = vand.u32 %v166, 4294901760
    %168 = vmatmul.f32.gmra.mxu0 %v167
    %v169 = vpop.f32.mrf.mxu0
    %v170 = vadd.f32 0.0, %v169
    %v171 = vand.u32 %v85, 4294901760
    %v172 = vsub.f32 %v85, %v171
    %v173 = vand.u32 %v172, 4294901760
    %v174 = vsub.f32 %v172, %v173
    %v175 = vand.u32 %v174, 4294901760
    %176 = vmatmul.f32.gmra.mxu0 %v175
    %v177 = vpop.f32.mrf.mxu0
    %v178 = vadd.f32 0.0, %v177
    %v179 = vand.u32 %v86, 4294901760
    %v180 = vsub.f32 %v86, %v179
    %v181 = vand.u32 %v180, 4294901760
    %v182 = vsub.f32 %v180, %v181
    %v183 = vand.u32 %v182, 4294901760
    %184 = vmatmul.f32.gmra.mxu0 %v183
    %v185 = vpop.f32.mrf.mxu0
    %v186 = vadd.f32 0.0, %v185
    %v187 = vand.u32 %v87, 4294901760
    %v188 = vsub.f32 %v87, %v187
    %v189 = vand.u32 %v188, 4294901760
    %v190 = vsub.f32 %v188, %v189
    %v191 = vand.u32 %v190, 4294901760
    %192 = vmatmul.f32.gmra.mxu0 %v191
    %v193 = vpop.f32.mrf.mxu0
    %v194 = vadd.f32 0.0, %v193
    %v195 = vand.u32 %v88, 4294901760
    %v196 = vsub.f32 %v88, %v195
    %v197 = vand.u32 %v196, 4294901760
    %v198 = vsub.f32 %v196, %v197
    %v199 = vand.u32 %v198, 4294901760
    %200 = vmatmul.f32.gmra.mxu0 %v199
    %v201 = vpop.f32.mrf.mxu0
    %v202 = vadd.f32 0.0, %v201
    %v203 = vand.u32 %v89, 4294901760
    %v204 = vsub.f32 %v89, %v203
    %v205 = vand.u32 %v204, 4294901760
    %v206 = vsub.f32 %v204, %v205
    %v207 = vand.u32 %v206, 4294901760
    %208 = vmatmul.f32.gmra.mxu0 %v207
    %v209 = vpop.f32.mrf.mxu0
    %v210 = vadd.f32 0.0, %v209
    %v211 = vand.u32 %v90, 4294901760
    %v212 = vsub.f32 %v90, %v211
    %v213 = vand.u32 %v212, 4294901760
    %v214 = vsub.f32 %v212, %v213
    %v215 = vand.u32 %v214, 4294901760
    %216 = vmatmul.f32.gmra.mxu0 %v215
    %v217 = vpop.f32.mrf.mxu0
    %v218 = vadd.f32 0.0, %v217
    %219 = vdwg.mxu0
    %v220 = vand.u32 %v106, 4294901760
    %v221 = vsub.f32 %v106, %v220
    %v222 = vand.u32 %v221, 4294901760
    %v223 = vsub.f32 %v221, %v222
    %v224 = vand.u32 %v223, 4294901760
    %225 = vmatpush.msra.mxu0 %v224
    %v226 = vand.u32 %v105, 4294901760
    %v227 = vsub.f32 %v105, %v226
    %v228 = vand.u32 %v227, 4294901760
    %v229 = vsub.f32 %v227, %v228
    %v230 = vand.u32 %v229, 4294901760
    %231 = vmatpush.msra.mxu0 %v230
    %v232 = vand.u32 %v104, 4294901760
    %v233 = vsub.f32 %v104, %v232
    %v234 = vand.u32 %v233, 4294901760
    %v235 = vsub.f32 %v233, %v234
    %v236 = vand.u32 %v235, 4294901760
    %237 = vmatpush.msra.mxu0 %v236
    %v238 = vand.u32 %v103, 4294901760
    %v239 = vsub.f32 %v103, %v238
    %v240 = vand.u32 %v239, 4294901760
    %v241 = vsub.f32 %v239, %v240
    %v242 = vand.u32 %v241, 4294901760
    %243 = vmatpush.msra.mxu0 %v242
    %v244 = vand.u32 %v102, 4294901760
    %v245 = vsub.f32 %v102, %v244
    %v246 = vand.u32 %v245, 4294901760
    %v247 = vsub.f32 %v245, %v246
    %v248 = vand.u32 %v247, 4294901760
    %249 = vmatpush.msra.mxu0 %v248
    %v250 = vand.u32 %v101, 4294901760
    %v251 = vsub.f32 %v101, %v250
    %v252 = vand.u32 %v251, 4294901760
    %v253 = vsub.f32 %v251, %v252
    %v254 = vand.u32 %v253, 4294901760
    %255 = vmatpush.msra.mxu0 %v254
    %v256 = vand.u32 %v100, 4294901760
    %v257 = vsub.f32 %v100, %v256
    %v258 = vand.u32 %v257, 4294901760
    %v259 = vsub.f32 %v257, %v258
    %v260 = vand.u32 %v259, 4294901760
    %261 = vmatpush.msra.mxu0 %v260
    %v262 = vand.u32 %v99, 4294901760
    %v263 = vsub.f32 %v99, %v262
    %v264 = vand.u32 %v263, 4294901760
    %v265 = vsub.f32 %v263, %v264
    %v266 = vand.u32 %v265, 4294901760
    %267 = vmatpush.msra.mxu0 %v266
    %v268 = vand.u32 %v98, 4294901760
    %v269 = vsub.f32 %v98, %v268
    %v270 = vand.u32 %v269, 4294901760
    %v271 = vsub.f32 %v269, %v270
    %v272 = vand.u32 %v271, 4294901760
    %273 = vmatpush.msra.mxu0 %v272
    %v274 = vand.u32 %v97, 4294901760
    %v275 = vsub.f32 %v97, %v274
    %v276 = vand.u32 %v275, 4294901760
    %v277 = vsub.f32 %v275, %v276
    %v278 = vand.u32 %v277, 4294901760
    %279 = vmatpush.msra.mxu0 %v278
    %v280 = vand.u32 %v96, 4294901760
    %v281 = vsub.f32 %v96, %v280
    %v282 = vand.u32 %v281, 4294901760
    %v283 = vsub.f32 %v281, %v282
    %v284 = vand.u32 %v283, 4294901760
    %285 = vmatpush.msra.mxu0 %v284
    %v286 = vand.u32 %v95, 4294901760
    %v287 = vsub.f32 %v95, %v286
    %v288 = vand.u32 %v287, 4294901760
    %v289 = vsub.f32 %v287, %v288
    %v290 = vand.u32 %v289, 4294901760
    %291 = vmatpush.msra.mxu0 %v290
    %v292 = vand.u32 %v94, 4294901760
    %v293 = vsub.f32 %v94, %v292
    %v294 = vand.u32 %v293, 4294901760
    %v295 = vsub.f32 %v293, %v294
    %v296 = vand.u32 %v295, 4294901760
    %297 = vmatpush.msra.mxu0 %v296
    %v298 = vand.u32 %v93, 4294901760
    %v299 = vsub.f32 %v93, %v298
    %v300 = vand.u32 %v299, 4294901760
    %v301 = vsub.f32 %v299, %v300
    %v302 = vand.u32 %v301, 4294901760
    %303 = vmatpush.msra.mxu0 %v302
    %v304 = vand.u32 %v92, 4294901760
    %v305 = vsub.f32 %v92, %v304
    %v306 = vand.u32 %v305, 4294901760
    %v307 = vsub.f32 %v305, %v306
    %v308 = vand.u32 %v307, 4294901760
    %309 = vmatpush.msra.mxu0 %v308
    %v310 = vand.u32 %v91, 4294901760
    %v311 = vsub.f32 %v91, %v310
    %v312 = vand.u32 %v311, 4294901760
    %v313 = vsub.f32 %v311, %v312
    %v314 = vand.u32 %v313, 4294901760
    %315 = vmatpush.msra.mxu0 %v314
    %v316 = vand.u32 %v81, 4294901760
    %317 = vmatmul.f32.gmra.mxu0 %v316
    %v318 = vpop.f32.mrf.mxu0
    %v319 = vadd.f32 %v146, %v318
    %v320 = vand.u32 %v82, 4294901760
    %321 = vmatmul.f32.gmra.mxu0 %v320
    %v322 = vpop.f32.mrf.mxu0
    %v323 = vadd.f32 %v154, %v322
    %v324 = vand.u32 %v83, 4294901760
    %325 = vmatmul.f32.gmra.mxu0 %v324
    %v326 = vpop.f32.mrf.mxu0
    %v327 = vadd.f32 %v162, %v326
    %v328 = vand.u32 %v84, 4294901760
    %329 = vmatmul.f32.gmra.mxu0 %v328
    %v330 = vpop.f32.mrf.mxu0
    %v331 = vadd.f32 %v170, %v330
    %v332 = vand.u32 %v85, 4294901760
    %333 = vmatmul.f32.gmra.mxu0 %v332
    %v334 = vpop.f32.mrf.mxu0
    %v335 = vadd.f32 %v178, %v334
    %v336 = vand.u32 %v86, 4294901760
    %337 = vmatmul.f32.gmra.mxu0 %v336
    %v338 = vpop.f32.mrf.mxu0
    %v339 = vadd.f32 %v186, %v338
    %v340 = vand.u32 %v87, 4294901760
    %341 = vmatmul.f32.gmra.mxu0 %v340
    %v342 = vpop.f32.mrf.mxu0
    %v343 = vadd.f32 %v194, %v342
    %v344 = vand.u32 %v88, 4294901760
    %345 = vmatmul.f32.gmra.mxu0 %v344
    %v346 = vpop.f32.mrf.mxu0
    %v347 = vadd.f32 %v202, %v346
    %v348 = vand.u32 %v89, 4294901760
    %349 = vmatmul.f32.gmra.mxu0 %v348
    %v350 = vpop.f32.mrf.mxu0
    %v351 = vadd.f32 %v210, %v350
    %v352 = vand.u32 %v90, 4294901760
    %353 = vmatmul.f32.gmra.mxu0 %v352
    %v354 = vpop.f32.mrf.mxu0
    %v355 = vadd.f32 %v218, %v354
    %356 = vdwg.mxu0
    %v357 = vand.u32 %v106, 4294901760
    %v358 = vsub.f32 %v106, %v357
    %359 = vmatpush.msra.mxu0 %v358
    %v360 = vand.u32 %v105, 4294901760
    %v361 = vsub.f32 %v105, %v360
    %362 = vmatpush.msra.mxu0 %v361
    %v363 = vand.u32 %v104, 4294901760
    %v364 = vsub.f32 %v104, %v363
    %365 = vmatpush.msra.mxu0 %v364
    %v366 = vand.u32 %v103, 4294901760
    %v367 = vsub.f32 %v103, %v366
    %368 = vmatpush.msra.mxu0 %v367
    %v369 = vand.u32 %v102, 4294901760
    %v370 = vsub.f32 %v102, %v369
    %371 = vmatpush.msra.mxu0 %v370
    %v372 = vand.u32 %v101, 4294901760
    %v373 = vsub.f32 %v101, %v372
    %374 = vmatpush.msra.mxu0 %v373
    %v375 = vand.u32 %v100, 4294901760
    %v376 = vsub.f32 %v100, %v375
    %377 = vmatpush.msra.mxu0 %v376
    %v378 = vand.u32 %v99, 4294901760
    %v379 = vsub.f32 %v99, %v378
    %380 = vmatpush.msra.mxu0 %v379
    %v381 = vand.u32 %v98, 4294901760
    %v382 = vsub.f32 %v98, %v381
    %383 = vmatpush.msra.mxu0 %v382
    %v384 = vand.u32 %v97, 4294901760
    %v385 = vsub.f32 %v97, %v384
    %386 = vmatpush.msra.mxu0 %v385
    %v387 = vand.u32 %v96, 4294901760
    %v388 = vsub.f32 %v96, %v387
    %389 = vmatpush.msra.mxu0 %v388
    %v390 = vand.u32 %v95, 4294901760
    %v391 = vsub.f32 %v95, %v390
    %392 = vmatpush.msra.mxu0 %v391
    %v393 = vand.u32 %v94, 4294901760
    %v394 = vsub.f32 %v94, %v393
    %395 = vmatpush.msra.mxu0 %v394
    %v396 = vand.u32 %v93, 4294901760
    %v397 = vsub.f32 %v93, %v396
    %398 = vmatpush.msra.mxu0 %v397
    %v399 = vand.u32 %v92, 4294901760
    %v400 = vsub.f32 %v92, %v399
    %401 = vmatpush.msra.mxu0 %v400
    %v402 = vand.u32 %v91, 4294901760
    %v403 = vsub.f32 %v91, %v402
    %404 = vmatpush.msra.mxu0 %v403
    %v405 = vand.u32 %v81, 4294901760
    %v406 = vsub.f32 %v81, %v405
    %407 = vmatmul.f32.gmra.mxu0 %v406
    %v408 = vpop.f32.mrf.mxu0
    %v409 = vadd.f32 %v319, %v408
    %v410 = vand.u32 %v82, 4294901760
    %v411 = vsub.f32 %v82, %v410
    %412 = vmatmul.f32.gmra.mxu0 %v411
    %v413 = vpop.f32.mrf.mxu0
    %v414 = vadd.f32 %v323, %v413
    %v415 = vand.u32 %v83, 4294901760
    %v416 = vsub.f32 %v83, %v415
    %417 = vmatmul.f32.gmra.mxu0 %v416
    %v418 = vpop.f32.mrf.mxu0
    %v419 = vadd.f32 %v327, %v418
    %v420 = vand.u32 %v84, 4294901760
    %v421 = vsub.f32 %v84, %v420
    %422 = vmatmul.f32.gmra.mxu0 %v421
    %v423 = vpop.f32.mrf.mxu0
    %v424 = vadd.f32 %v331, %v423
    %v425 = vand.u32 %v85, 4294901760
    %v426 = vsub.f32 %v85, %v425
    %427 = vmatmul.f32.gmra.mxu0 %v426
    %v428 = vpop.f32.mrf.mxu0
    %v429 = vadd.f32 %v335, %v428
    %v430 = vand.u32 %v86, 4294901760
    %v431 = vsub.f32 %v86, %v430
    %432 = vmatmul.f32.gmra.mxu0 %v431
    %v433 = vpop.f32.mrf.mxu0
    %v434 = vadd.f32 %v339, %v433
    %v435 = vand.u32 %v87, 4294901760
    %v436 = vsub.f32 %v87, %v435
    %437 = vmatmul.f32.gmra.mxu0 %v436
    %v438 = vpop.f32.mrf.mxu0
    %v439 = vadd.f32 %v343, %v438
    %v440 = vand.u32 %v88, 4294901760
    %v441 = vsub.f32 %v88, %v440
    %442 = vmatmul.f32.gmra.mxu0 %v441
    %v443 = vpop.f32.mrf.mxu0
    %v444 = vadd.f32 %v347, %v443
    %v445 = vand.u32 %v89, 4294901760
    %v446 = vsub.f32 %v89, %v445
    %447 = vmatmul.f32.gmra.mxu0 %v446
    %v448 = vpop.f32.mrf.mxu0
    %v449 = vadd.f32 %v351, %v448
    %v450 = vand.u32 %v90, 4294901760
    %v451 = vsub.f32 %v90, %v450
    %452 = vmatmul.f32.gmra.mxu0 %v451
    %v453 = vpop.f32.mrf.mxu0
    %v454 = vadd.f32 %v355, %v453
    %455 = vdwg.mxu0
    %v456 = vand.u32 %v106, 4294901760
    %457 = vmatpush.msra.mxu0 %v456
    %v458 = vand.u32 %v105, 4294901760
    %459 = vmatpush.msra.mxu0 %v458
    %v460 = vand.u32 %v104, 4294901760
    %461 = vmatpush.msra.mxu0 %v460
    %v462 = vand.u32 %v103, 4294901760
    %463 = vmatpush.msra.mxu0 %v462
    %v464 = vand.u32 %v102, 4294901760
    %465 = vmatpush.msra.mxu0 %v464
    %v466 = vand.u32 %v101, 4294901760
    %467 = vmatpush.msra.mxu0 %v466
    %v468 = vand.u32 %v100, 4294901760
    %469 = vmatpush.msra.mxu0 %v468
    %v470 = vand.u32 %v99, 4294901760
    %471 = vmatpush.msra.mxu0 %v470
    %v472 = vand.u32 %v98, 4294901760
    %473 = vmatpush.msra.mxu0 %v472
    %v474 = vand.u32 %v97, 4294901760
    %475 = vmatpush.msra.mxu0 %v474
    %v476 = vand.u32 %v96, 4294901760
    %477 = vmatpush.msra.mxu0 %v476
    %v478 = vand.u32 %v95, 4294901760
    %479 = vmatpush.msra.mxu0 %v478
    %v480 = vand.u32 %v94, 4294901760
    %481 = vmatpush.msra.mxu0 %v480
    %v482 = vand.u32 %v93, 4294901760
    %483 = vmatpush.msra.mxu0 %v482
    %v484 = vand.u32 %v92, 4294901760
    %485 = vmatpush.msra.mxu0 %v484
    %v486 = vand.u32 %v91, 4294901760
    %487 = vmatpush.msra.mxu0 %v486
    %v488 = vand.u32 %v81, 4294901760
    %v489 = vsub.f32 %v81, %v488
    %v490 = vand.u32 %v489, 4294901760
    %491 = vmatmul.f32.gmra.mxu0 %v490
    %v492 = vpop.f32.mrf.mxu0
    %v493 = vadd.f32 %v409, %v492
    %v494 = vand.u32 %v82, 4294901760
    %v495 = vsub.f32 %v82, %v494
    %v496 = vand.u32 %v495, 4294901760
    %497 = vmatmul.f32.gmra.mxu0 %v496
    %v498 = vpop.f32.mrf.mxu0
    %v499 = vadd.f32 %v414, %v498
    %v500 = vand.u32 %v83, 4294901760
    %v501 = vsub.f32 %v83, %v500
    %v502 = vand.u32 %v501, 4294901760
    %503 = vmatmul.f32.gmra.mxu0 %v502
    %v504 = vpop.f32.mrf.mxu0
    %v505 = vadd.f32 %v419, %v504
    %v506 = vand.u32 %v84, 4294901760
    %v507 = vsub.f32 %v84, %v506
    %v508 = vand.u32 %v507, 4294901760
    %509 = vmatmul.f32.gmra.mxu0 %v508
    %v510 = vpop.f32.mrf.mxu0
    %v511 = vadd.f32 %v424, %v510
    %v512 = vand.u32 %v85, 4294901760
    %v513 = vsub.f32 %v85, %v512
    %v514 = vand.u32 %v513, 4294901760
    %515 = vmatmul.f32.gmra.mxu0 %v514
    %v516 = vpop.f32.mrf.mxu0
    %v517 = vadd.f32 %v429, %v516
    %v518 = vand.u32 %v86, 4294901760
    %v519 = vsub.f32 %v86, %v518
    %v520 = vand.u32 %v519, 4294901760
    %521 = vmatmul.f32.gmra.mxu0 %v520
    %v522 = vpop.f32.mrf.mxu0
    %v523 = vadd.f32 %v434, %v522
    %v524 = vand.u32 %v87, 4294901760
    %v525 = vsub.f32 %v87, %v524
    %v526 = vand.u32 %v525, 4294901760
    %527 = vmatmul.f32.gmra.mxu0 %v526
    %v528 = vpop.f32.mrf.mxu0
    %v529 = vadd.f32 %v439, %v528
    %v530 = vand.u32 %v88, 4294901760
    %v531 = vsub.f32 %v88, %v530
    %v532 = vand.u32 %v531, 4294901760
    %533 = vmatmul.f32.gmra.mxu0 %v532
    %v534 = vpop.f32.mrf.mxu0
    %v535 = vadd.f32 %v444, %v534
    %v536 = vand.u32 %v89, 4294901760
    %v537 = vsub.f32 %v89, %v536
    %v538 = vand.u32 %v537, 4294901760
    %539 = vmatmul.f32.gmra.mxu0 %v538
    %v540 = vpop.f32.mrf.mxu0
    %v541 = vadd.f32 %v449, %v540
    %v542 = vand.u32 %v90, 4294901760
    %v543 = vsub.f32 %v90, %v542
    %v544 = vand.u32 %v543, 4294901760
    %545 = vmatmul.f32.gmra.mxu0 %v544
    %v546 = vpop.f32.mrf.mxu0
    %v547 = vadd.f32 %v454, %v546
    %548 = vdwg.mxu0
    %v549 = vand.u32 %v106, 4294901760
    %v550 = vsub.f32 %v106, %v549
    %v551 = vand.u32 %v550, 4294901760
    %552 = vmatpush.msra.mxu0 %v551
    %v553 = vand.u32 %v105, 4294901760
    %v554 = vsub.f32 %v105, %v553
    %v555 = vand.u32 %v554, 4294901760
    %556 = vmatpush.msra.mxu0 %v555
    %v557 = vand.u32 %v104, 4294901760
    %v558 = vsub.f32 %v104, %v557
    %v559 = vand.u32 %v558, 4294901760
    %560 = vmatpush.msra.mxu0 %v559
    %v561 = vand.u32 %v103, 4294901760
    %v562 = vsub.f32 %v103, %v561
    %v563 = vand.u32 %v562, 4294901760
    %564 = vmatpush.msra.mxu0 %v563
    %v565 = vand.u32 %v102, 4294901760
    %v566 = vsub.f32 %v102, %v565
    %v567 = vand.u32 %v566, 4294901760
    %568 = vmatpush.msra.mxu0 %v567
    %v569 = vand.u32 %v101, 4294901760
    %v570 = vsub.f32 %v101, %v569
    %v571 = vand.u32 %v570, 4294901760
    %572 = vmatpush.msra.mxu0 %v571
    %v573 = vand.u32 %v100, 4294901760
    %v574 = vsub.f32 %v100, %v573
    %v575 = vand.u32 %v574, 4294901760
    %576 = vmatpush.msra.mxu0 %v575
    %v577 = vand.u32 %v99, 4294901760
    %v578 = vsub.f32 %v99, %v577
    %v579 = vand.u32 %v578, 4294901760
    %580 = vmatpush.msra.mxu0 %v579
    %v581 = vand.u32 %v98, 4294901760
    %v582 = vsub.f32 %v98, %v581
    %v583 = vand.u32 %v582, 4294901760
    %584 = vmatpush.msra.mxu0 %v583
    %v585 = vand.u32 %v97, 4294901760
    %v586 = vsub.f32 %v97, %v585
    %v587 = vand.u32 %v586, 4294901760
    %588 = vmatpush.msra.mxu0 %v587
    %v589 = vand.u32 %v96, 4294901760
    %v590 = vsub.f32 %v96, %v589
    %v591 = vand.u32 %v590, 4294901760
    %592 = vmatpush.msra.mxu0 %v591
    %v593 = vand.u32 %v95, 4294901760
    %v594 = vsub.f32 %v95, %v593
    %v595 = vand.u32 %v594, 4294901760
    %596 = vmatpush.msra.mxu0 %v595
    %v597 = vand.u32 %v94, 4294901760
    %v598 = vsub.f32 %v94, %v597
    %v599 = vand.u32 %v598, 4294901760
    %600 = vmatpush.msra.mxu0 %v599
    %v601 = vand.u32 %v93, 4294901760
    %v602 = vsub.f32 %v93, %v601
    %v603 = vand.u32 %v602, 4294901760
    %604 = vmatpush.msra.mxu0 %v603
    %v605 = vand.u32 %v92, 4294901760
    %v606 = vsub.f32 %v92, %v605
    %v607 = vand.u32 %v606, 4294901760
    %608 = vmatpush.msra.mxu0 %v607
    %v609 = vand.u32 %v91, 4294901760
    %v610 = vsub.f32 %v91, %v609
    %v611 = vand.u32 %v610, 4294901760
    %612 = vmatpush.msra.mxu0 %v611
    %v613 = vand.u32 %v81, 4294901760
    %614 = vmatmul.f32.gmra.mxu0 %v613
    %v615 = vpop.f32.mrf.mxu0
    %v616 = vadd.f32 %v493, %v615
    %v617 = vand.u32 %v82, 4294901760
    %618 = vmatmul.f32.gmra.mxu0 %v617
    %v619 = vpop.f32.mrf.mxu0
    %v620 = vadd.f32 %v499, %v619
    %v621 = vand.u32 %v83, 4294901760
    %622 = vmatmul.f32.gmra.mxu0 %v621
    %v623 = vpop.f32.mrf.mxu0
    %v624 = vadd.f32 %v505, %v623
    %v625 = vand.u32 %v84, 4294901760
    %626 = vmatmul.f32.gmra.mxu0 %v625
    %v627 = vpop.f32.mrf.mxu0
    %v628 = vadd.f32 %v511, %v627
    %v629 = vand.u32 %v85, 4294901760
    %630 = vmatmul.f32.gmra.mxu0 %v629
    %v631 = vpop.f32.mrf.mxu0
    %v632 = vadd.f32 %v517, %v631
    %v633 = vand.u32 %v86, 4294901760
    %634 = vmatmul.f32.gmra.mxu0 %v633
    %v635 = vpop.f32.mrf.mxu0
    %v636 = vadd.f32 %v523, %v635
    %v637 = vand.u32 %v87, 4294901760
    %638 = vmatmul.f32.gmra.mxu0 %v637
    %v639 = vpop.f32.mrf.mxu0
    %v640 = vadd.f32 %v529, %v639
    %v641 = vand.u32 %v88, 4294901760
    %642 = vmatmul.f32.gmra.mxu0 %v641
    %v643 = vpop.f32.mrf.mxu0
    %v644 = vadd.f32 %v535, %v643
    %v645 = vand.u32 %v89, 4294901760
    %646 = vmatmul.f32.gmra.mxu0 %v645
    %v647 = vpop.f32.mrf.mxu0
    %v648 = vadd.f32 %v541, %v647
    %v649 = vand.u32 %v90, 4294901760
    %650 = vmatmul.f32.gmra.mxu0 %v649
    %v651 = vpop.f32.mrf.mxu0
    %v652 = vadd.f32 %v547, %v651
    %653 = vdwg.mxu0
    %v654 = vand.u32 %v106, 4294901760
    %655 = vmatpush.msra.mxu0 %v654
    %v656 = vand.u32 %v105, 4294901760
    %657 = vmatpush.msra.mxu0 %v656
    %v658 = vand.u32 %v104, 4294901760
    %659 = vmatpush.msra.mxu0 %v658
    %v660 = vand.u32 %v103, 4294901760
    %661 = vmatpush.msra.mxu0 %v660
    %v662 = vand.u32 %v102, 4294901760
    %663 = vmatpush.msra.mxu0 %v662
    %v664 = vand.u32 %v101, 4294901760
    %665 = vmatpush.msra.mxu0 %v664
    %v666 = vand.u32 %v100, 4294901760
    %667 = vmatpush.msra.mxu0 %v666
    %v668 = vand.u32 %v99, 4294901760
    %669 = vmatpush.msra.mxu0 %v668
    %v670 = vand.u32 %v98, 4294901760
    %671 = vmatpush.msra.mxu0 %v670
    %v672 = vand.u32 %v97, 4294901760
    %673 = vmatpush.msra.mxu0 %v672
    %v674 = vand.u32 %v96, 4294901760
    %675 = vmatpush.msra.mxu0 %v674
    %v676 = vand.u32 %v95, 4294901760
    %677 = vmatpush.msra.mxu0 %v676
    %v678 = vand.u32 %v94, 4294901760
    %679 = vmatpush.msra.mxu0 %v678
    %v680 = vand.u32 %v93, 4294901760
    %681 = vmatpush.msra.mxu0 %v680
    %v682 = vand.u32 %v92, 4294901760
    %683 = vmatpush.msra.mxu0 %v682
    %v684 = vand.u32 %v91, 4294901760
    %685 = vmatpush.msra.mxu0 %v684
    %v686 = vand.u32 %v81, 4294901760
    %687 = vmatmul.f32.gmra.mxu0 %v686
    %v688 = vpop.f32.mrf.mxu0
    %v689 = vadd.f32 %v616, %v688
    %v690 = vand.u32 %v82, 4294901760
    %691 = vmatmul.f32.gmra.mxu0 %v690
    %v692 = vpop.f32.mrf.mxu0
    %v693 = vadd.f32 %v620, %v692
    %v694 = vand.u32 %v83, 4294901760
    %695 = vmatmul.f32.gmra.mxu0 %v694
    %v696 = vpop.f32.mrf.mxu0
    %v697 = vadd.f32 %v624, %v696
    %v698 = vand.u32 %v84, 4294901760
    %699 = vmatmul.f32.gmra.mxu0 %v698
    %v700 = vpop.f32.mrf.mxu0
    %v701 = vadd.f32 %v628, %v700
    %v702 = vand.u32 %v85, 4294901760
    %703 = vmatmul.f32.gmra.mxu0 %v702
    %v704 = vpop.f32.mrf.mxu0
    %v705 = vadd.f32 %v632, %v704
    %v706 = vand.u32 %v86, 4294901760
    %707 = vmatmul.f32.gmra.mxu0 %v706
    %v708 = vpop.f32.mrf.mxu0
    %v709 = vadd.f32 %v636, %v708
    %v710 = vand.u32 %v87, 4294901760
    %711 = vmatmul.f32.gmra.mxu0 %v710
    %v712 = vpop.f32.mrf.mxu0
    %v713 = vadd.f32 %v640, %v712
    %v714 = vand.u32 %v88, 4294901760
    %715 = vmatmul.f32.gmra.mxu0 %v714
    %v716 = vpop.f32.mrf.mxu0
    %v717 = vadd.f32 %v644, %v716
    %v718 = vand.u32 %v89, 4294901760
    %719 = vmatmul.f32.gmra.mxu0 %v718
    %v720 = vpop.f32.mrf.mxu0
    %v721 = vadd.f32 %v648, %v720
    %v722 = vand.u32 %v90, 4294901760
    %723 = vmatmul.f32.gmra.mxu0 %v722
    %v724 = vpop.f32.mrf.mxu0
    %v725 = vadd.f32 %v652, %v724
    %726 = vdwg.mxu0
    %v727 = vld [vmem:[#allocation5] sm:$0xff]
    %v728 = vld [vmem:[#allocation5 + $0x8] sm:$0xff]
    %vm729 = vcmask 130048
    %v731 = vsel %vm729, %v727, 0
    %v734 = vsel %vm729, %v728, 0
    %736 = vmatpush.msra.mxu0 0.0
    %737 = vmatpush.msra.mxu0 0.0
    %738 = vmatpush.msra.mxu0 0.0
    %739 = vmatpush.msra.mxu0 0.0
    %740 = vmatpush.msra.mxu0 0.0
    %741 = vmatpush.msra.mxu0 0.0
    %742 = vmatpush.msra.mxu0 0.0
    %743 = vmatpush.msra.mxu0 0.0
    %744 = vmatpush.msra.mxu0 0.0
    %745 = vmatpush.msra.mxu0 0.0
    %746 = vmatpush.msra.mxu0 0.0
    %747 = vmatpush.msra.mxu0 0.0
    %748 = vmatpush.msra.mxu0 0.0
    %749 = vmatpush.msra.mxu0 0.0
    %v750 = vand.u32 %v693, 4294901760
    %751 = vmatpush.msra.mxu0 %v750
    %v752 = vand.u32 %v689, 4294901760
    %753 = vmatpush.msra.mxu0 %v752
    %v754 = vand.u32 %v731, 4294901760
    %v755 = vsub.f32 %v731, %v754
    %v756 = vand.u32 %v755, 4294901760
    %v757 = vsub.f32 %v755, %v756
    %v758 = vand.u32 %v757, 4294901760
    %759 = vmatmul.f32.gmra.mxu0 %v758
    %v760 = vpop.f32.mrf.mxu0
    %v761 = vadd.f32 0.0, %v760
    %v762 = vand.u32 %v734, 4294901760
    %v763 = vsub.f32 %v734, %v762
    %v764 = vand.u32 %v763, 4294901760
    %v765 = vsub.f32 %v763, %v764
    %v766 = vand.u32 %v765, 4294901760
    %767 = vmatmul.f32.gmra.mxu0 %v766
    %v768 = vpop.f32.mrf.mxu0
    %v769 = vadd.f32 0.0, %v768
    %770 = vdwg.mxu0
    %771 = vmatpush.msra.mxu0 0.0
    %772 = vmatpush.msra.mxu0 0.0
    %773 = vmatpush.msra.mxu0 0.0
    %774 = vmatpush.msra.mxu0 0.0
    %775 = vmatpush.msra.mxu0 0.0
    %776 = vmatpush.msra.mxu0 0.0
    %777 = vmatpush.msra.mxu0 0.0
    %778 = vmatpush.msra.mxu0 0.0
    %779 = vmatpush.msra.mxu0 0.0
    %780 = vmatpush.msra.mxu0 0.0
    %781 = vmatpush.msra.mxu0 0.0
    %782 = vmatpush.msra.mxu0 0.0
    %783 = vmatpush.msra.mxu0 0.0
    %784 = vmatpush.msra.mxu0 0.0
    %v785 = vand.u32 %v693, 4294901760
    %v786 = vsub.f32 %v693, %v785
    %v787 = vand.u32 %v786, 4294901760
    %v788 = vsub.f32 %v786, %v787
    %v789 = vand.u32 %v788, 4294901760
    %790 = vmatpush.msra.mxu0 %v789
    %v791 = vand.u32 %v689, 4294901760
    %v792 = vsub.f32 %v689, %v791
    %v793 = vand.u32 %v792, 4294901760
    %v794 = vsub.f32 %v792, %v793
    %v795 = vand.u32 %v794, 4294901760
    %796 = vmatpush.msra.mxu0 %v795
    %v797 = vand.u32 %v731, 4294901760
    %798 = vmatmul.f32.gmra.mxu0 %v797
    %v799 = vpop.f32.mrf.mxu0
    %v800 = vadd.f32 %v761, %v799
    %v801 = vand.u32 %v734, 4294901760
    %802 = vmatmul.f32.gmra.mxu0 %v801
    %v803 = vpop.f32.mrf.mxu0
    %v804 = vadd.f32 %v769, %v803
    %805 = vdwg.mxu0
    %806 = vmatpush.msra.mxu0 0.0
    %807 = vmatpush.msra.mxu0 0.0
    %808 = vmatpush.msra.mxu0 0.0
    %809 = vmatpush.msra.mxu0 0.0
    %810 = vmatpush.msra.mxu0 0.0
    %811 = vmatpush.msra.mxu0 0.0
    %812 = vmatpush.msra.mxu0 0.0
    %813 = vmatpush.msra.mxu0 0.0
    %814 = vmatpush.msra.mxu0 0.0
    %815 = vmatpush.msra.mxu0 0.0
    %816 = vmatpush.msra.mxu0 0.0
    %817 = vmatpush.msra.mxu0 0.0
    %818 = vmatpush.msra.mxu0 0.0
    %819 = vmatpush.msra.mxu0 0.0
    %v820 = vand.u32 %v693, 4294901760
    %v821 = vsub.f32 %v693, %v820
    %822 = vmatpush.msra.mxu0 %v821
    %v823 = vand.u32 %v689, 4294901760
    %v824 = vsub.f32 %v689, %v823
    %825 = vmatpush.msra.mxu0 %v824
    %v826 = vand.u32 %v731, 4294901760
    %v827 = vsub.f32 %v731, %v826
    %828 = vmatmul.f32.gmra.mxu0 %v827
    %v829 = vpop.f32.mrf.mxu0
    %v830 = vadd.f32 %v800, %v829
    %v831 = vand.u32 %v734, 4294901760
    %v832 = vsub.f32 %v734, %v831
    %833 = vmatmul.f32.gmra.mxu0 %v832
    %v834 = vpop.f32.mrf.mxu0
    %v835 = vadd.f32 %v804, %v834
    %836 = vdwg.mxu0
    %837 = vmatpush.msra.mxu0 0.0
    %838 = vmatpush.msra.mxu0 0.0
    %839 = vmatpush.msra.mxu0 0.0
    %840 = vmatpush.msra.mxu0 0.0
    %841 = vmatpush.msra.mxu0 0.0
    %842 = vmatpush.msra.mxu0 0.0
    %843 = vmatpush.msra.mxu0 0.0
    %844 = vmatpush.msra.mxu0 0.0
    %845 = vmatpush.msra.mxu0 0.0
    %846 = vmatpush.msra.mxu0 0.0
    %847 = vmatpush.msra.mxu0 0.0
    %848 = vmatpush.msra.mxu0 0.0
    %849 = vmatpush.msra.mxu0 0.0
    %850 = vmatpush.msra.mxu0 0.0
    %v851 = vand.u32 %v693, 4294901760
    %852 = vmatpush.msra.mxu0 %v851
    %v853 = vand.u32 %v689, 4294901760
    %854 = vmatpush.msra.mxu0 %v853
    %v855 = vand.u32 %v731, 4294901760
    %v856 = vsub.f32 %v731, %v855
    %v857 = vand.u32 %v856, 4294901760
    %858 = vmatmul.f32.gmra.mxu0 %v857
    %v859 = vpop.f32.mrf.mxu0
    %v860 = vadd.f32 %v830, %v859
    %v861 = vand.u32 %v734, 4294901760
    %v862 = vsub.f32 %v734, %v861
    %v863 = vand.u32 %v862, 4294901760
    %864 = vmatmul.f32.gmra.mxu0 %v863
    %v865 = vpop.f32.mrf.mxu0
    %v866 = vadd.f32 %v835, %v865
    %867 = vdwg.mxu0
    %868 = vmatpush.msra.mxu0 0.0
    %869 = vmatpush.msra.mxu0 0.0
    %870 = vmatpush.msra.mxu0 0.0
    %871 = vmatpush.msra.mxu0 0.0
    %872 = vmatpush.msra.mxu0 0.0
    %873 = vmatpush.msra.mxu0 0.0
    %874 = vmatpush.msra.mxu0 0.0
    %875 = vmatpush.msra.mxu0 0.0
    %876 = vmatpush.msra.mxu0 0.0
    %877 = vmatpush.msra.mxu0 0.0
    %878 = vmatpush.msra.mxu0 0.0
    %879 = vmatpush.msra.mxu0 0.0
    %880 = vmatpush.msra.mxu0 0.0
    %881 = vmatpush.msra.mxu0 0.0
    %v882 = vand.u32 %v693, 4294901760
    %v883 = vsub.f32 %v693, %v882
    %v884 = vand.u32 %v883, 4294901760
    %885 = vmatpush.msra.mxu0 %v884
    %v886 = vand.u32 %v689, 4294901760
    %v887 = vsub.f32 %v689, %v886
    %v888 = vand.u32 %v887, 4294901760
    %889 = vmatpush.msra.mxu0 %v888
    %v890 = vand.u32 %v731, 4294901760
    %891 = vmatmul.f32.gmra.mxu0 %v890
    %v892 = vpop.f32.mrf.mxu0
    %v893 = vadd.f32 %v860, %v892
    %v894 = vand.u32 %v734, 4294901760
    %895 = vmatmul.f32.gmra.mxu0 %v894
    %v896 = vpop.f32.mrf.mxu0
    %v897 = vadd.f32 %v866, %v896
    %898 = vdwg.mxu0
    %899 = vmatpush.msra.mxu0 0.0
    %900 = vmatpush.msra.mxu0 0.0
    %901 = vmatpush.msra.mxu0 0.0
    %902 = vmatpush.msra.mxu0 0.0
    %903 = vmatpush.msra.mxu0 0.0
    %904 = vmatpush.msra.mxu0 0.0
    %905 = vmatpush.msra.mxu0 0.0
    %906 = vmatpush.msra.mxu0 0.0
    %907 = vmatpush.msra.mxu0 0.0
    %908 = vmatpush.msra.mxu0 0.0
    %909 = vmatpush.msra.mxu0 0.0
    %910 = vmatpush.msra.mxu0 0.0
    %911 = vmatpush.msra.mxu0 0.0
    %912 = vmatpush.msra.mxu0 0.0
    %v913 = vand.u32 %v693, 4294901760
    %914 = vmatpush.msra.mxu0 %v913
    %v915 = vand.u32 %v689, 4294901760
    %916 = vmatpush.msra.mxu0 %v915
    %v917 = vand.u32 %v731, 4294901760
    %918 = vmatmul.f32.gmra.mxu0 %v917
    %v919 = vpop.f32.mrf.mxu0
    %v920 = vadd.f32 %v893, %v919
    %v921 = vand.u32 %v734, 4294901760
    %922 = vmatmul.f32.gmra.mxu0 %v921
    %v923 = vpop.f32.mrf.mxu0
    %v924 = vadd.f32 %v897, %v923
    %925 = vdwg.mxu0
    %926 = vmatpush.msra.mxu0 0.0
    %927 = vmatpush.msra.mxu0 0.0
    %928 = vmatpush.msra.mxu0 0.0
    %929 = vmatpush.msra.mxu0 0.0
    %930 = vmatpush.msra.mxu0 0.0
    %931 = vmatpush.msra.mxu0 0.0
    %932 = vmatpush.msra.mxu0 0.0
    %933 = vmatpush.msra.mxu0 0.0
    %934 = vmatpush.msra.mxu0 0.0
    %935 = vmatpush.msra.mxu0 0.0
    %936 = vmatpush.msra.mxu0 0.0
    %937 = vmatpush.msra.mxu0 0.0
    %938 = vmatpush.msra.mxu0 0.0
    %939 = vmatpush.msra.mxu0 0.0
    %v940 = vand.u32 %v701, 4294901760
    %941 = vmatpush.msra.mxu0 %v940
    %v942 = vand.u32 %v697, 4294901760
    %943 = vmatpush.msra.mxu0 %v942
    %v944 = vand.u32 %v731, 4294901760
    %v945 = vsub.f32 %v731, %v944
    %v946 = vand.u32 %v945, 4294901760
    %v947 = vsub.f32 %v945, %v946
    %v948 = vand.u32 %v947, 4294901760
    %949 = vmatmul.f32.gmra.mxu0 %v948
    %v950 = vpop.f32.mrf.mxu0
    %v951 = vadd.f32 0.0, %v950
    %v952 = vand.u32 %v734, 4294901760
    %v953 = vsub.f32 %v734, %v952
    %v954 = vand.u32 %v953, 4294901760
    %v955 = vsub.f32 %v953, %v954
    %v956 = vand.u32 %v955, 4294901760
    %957 = vmatmul.f32.gmra.mxu0 %v956
    %v958 = vpop.f32.mrf.mxu0
    %v959 = vadd.f32 0.0, %v958
    %960 = vdwg.mxu0
    %961 = vmatpush.msra.mxu0 0.0
    %962 = vmatpush.msra.mxu0 0.0
    %963 = vmatpush.msra.mxu0 0.0
    %964 = vmatpush.msra.mxu0 0.0
    %965 = vmatpush.msra.mxu0 0.0
    %966 = vmatpush.msra.mxu0 0.0
    %967 = vmatpush.msra.mxu0 0.0
    %968 = vmatpush.msra.mxu0 0.0
    %969 = vmatpush.msra.mxu0 0.0
    %970 = vmatpush.msra.mxu0 0.0
    %971 = vmatpush.msra.mxu0 0.0
    %972 = vmatpush.msra.mxu0 0.0
    %973 = vmatpush.msra.mxu0 0.0
    %974 = vmatpush.msra.mxu0 0.0
    %v975 = vand.u32 %v701, 4294901760
    %v976 = vsub.f32 %v701, %v975
    %v977 = vand.u32 %v976, 4294901760
    %v978 = vsub.f32 %v976, %v977
    %v979 = vand.u32 %v978, 4294901760
    %980 = vmatpush.msra.mxu0 %v979
    %v981 = vand.u32 %v697, 4294901760
    %v982 = vsub.f32 %v697, %v981
    %v983 = vand.u32 %v982, 4294901760
    %v984 = vsub.f32 %v982, %v983
    %v985 = vand.u32 %v984, 4294901760
    %986 = vmatpush.msra.mxu0 %v985
    %v987 = vand.u32 %v731, 4294901760
    %988 = vmatmul.f32.gmra.mxu0 %v987
    %v989 = vpop.f32.mrf.mxu0
    %v990 = vadd.f32 %v951, %v989
    %v991 = vand.u32 %v734, 4294901760
    %992 = vmatmul.f32.gmra.mxu0 %v991
    %v993 = vpop.f32.mrf.mxu0
    %v994 = vadd.f32 %v959, %v993
    %995 = vdwg.mxu0
    %996 = vmatpush.msra.mxu0 0.0
    %997 = vmatpush.msra.mxu0 0.0
    %998 = vmatpush.msra.mxu0 0.0
    %999 = vmatpush.msra.mxu0 0.0
    %1000 = vmatpush.msra.mxu0 0.0
    %1001 = vmatpush.msra.mxu0 0.0
    %1002 = vmatpush.msra.mxu0 0.0
    %1003 = vmatpush.msra.mxu0 0.0
    %1004 = vmatpush.msra.mxu0 0.0
    %1005 = vmatpush.msra.mxu0 0.0
    %1006 = vmatpush.msra.mxu0 0.0
    %1007 = vmatpush.msra.mxu0 0.0
    %1008 = vmatpush.msra.mxu0 0.0
    %1009 = vmatpush.msra.mxu0 0.0
    %v1010 = vand.u32 %v701, 4294901760
    %v1011 = vsub.f32 %v701, %v1010
    %1012 = vmatpush.msra.mxu0 %v1011
    %v1013 = vand.u32 %v697, 4294901760
    %v1014 = vsub.f32 %v697, %v1013
    %1015 = vmatpush.msra.mxu0 %v1014
    %v1016 = vand.u32 %v731, 4294901760
    %v1017 = vsub.f32 %v731, %v1016
    %1018 = vmatmul.f32.gmra.mxu0 %v1017
    %v1019 = vpop.f32.mrf.mxu0
    %v1020 = vadd.f32 %v990, %v1019
    %v1021 = vand.u32 %v734, 4294901760
    %v1022 = vsub.f32 %v734, %v1021
    %1023 = vmatmul.f32.gmra.mxu0 %v1022
    %v1024 = vpop.f32.mrf.mxu0
    %v1025 = vadd.f32 %v994, %v1024
    %1026 = vdwg.mxu0
    %1027 = vmatpush.msra.mxu0 0.0
    %1028 = vmatpush.msra.mxu0 0.0
    %1029 = vmatpush.msra.mxu0 0.0
    %1030 = vmatpush.msra.mxu0 0.0
    %1031 = vmatpush.msra.mxu0 0.0
    %1032 = vmatpush.msra.mxu0 0.0
    %1033 = vmatpush.msra.mxu0 0.0
    %1034 = vmatpush.msra.mxu0 0.0
    %1035 = vmatpush.msra.mxu0 0.0
    %1036 = vmatpush.msra.mxu0 0.0
    %1037 = vmatpush.msra.mxu0 0.0
    %1038 = vmatpush.msra.mxu0 0.0
    %1039 = vmatpush.msra.mxu0 0.0
    %1040 = vmatpush.msra.mxu0 0.0
    %v1041 = vand.u32 %v701, 4294901760
    %1042 = vmatpush.msra.mxu0 %v1041
    %v1043 = vand.u32 %v697, 4294901760
    %1044 = vmatpush.msra.mxu0 %v1043
    %v1045 = vand.u32 %v731, 4294901760
    %v1046 = vsub.f32 %v731, %v1045
    %v1047 = vand.u32 %v1046, 4294901760
    %1048 = vmatmul.f32.gmra.mxu0 %v1047
    %v1049 = vpop.f32.mrf.mxu0
    %v1050 = vadd.f32 %v1020, %v1049
    %v1051 = vand.u32 %v734, 4294901760
    %v1052 = vsub.f32 %v734, %v1051
    %v1053 = vand.u32 %v1052, 4294901760
    %1054 = vmatmul.f32.gmra.mxu0 %v1053
    %v1055 = vpop.f32.mrf.mxu0
    %v1056 = vadd.f32 %v1025, %v1055
    %1057 = vdwg.mxu0
    %1058 = vmatpush.msra.mxu0 0.0
    %1059 = vmatpush.msra.mxu0 0.0
    %1060 = vmatpush.msra.mxu0 0.0
    %1061 = vmatpush.msra.mxu0 0.0
    %1062 = vmatpush.msra.mxu0 0.0
    %1063 = vmatpush.msra.mxu0 0.0
    %1064 = vmatpush.msra.mxu0 0.0
    %1065 = vmatpush.msra.mxu0 0.0
    %1066 = vmatpush.msra.mxu0 0.0
    %1067 = vmatpush.msra.mxu0 0.0
    %1068 = vmatpush.msra.mxu0 0.0
    %1069 = vmatpush.msra.mxu0 0.0
    %1070 = vmatpush.msra.mxu0 0.0
    %1071 = vmatpush.msra.mxu0 0.0
    %v1072 = vand.u32 %v701, 4294901760
    %v1073 = vsub.f32 %v701, %v1072
    %v1074 = vand.u32 %v1073, 4294901760
    %1075 = vmatpush.msra.mxu0 %v1074
    %v1076 = vand.u32 %v697, 4294901760
    %v1077 = vsub.f32 %v697, %v1076
    %v1078 = vand.u32 %v1077, 4294901760
    %1079 = vmatpush.msra.mxu0 %v1078
    %v1080 = vand.u32 %v731, 4294901760
    %1081 = vmatmul.f32.gmra.mxu0 %v1080
    %v1082 = vpop.f32.mrf.mxu0
    %v1083 = vadd.f32 %v1050, %v1082
    %v1084 = vand.u32 %v734, 4294901760
    %1085 = vmatmul.f32.gmra.mxu0 %v1084
    %v1086 = vpop.f32.mrf.mxu0
    %v1087 = vadd.f32 %v1056, %v1086
    %1088 = vdwg.mxu0
    %1089 = vmatpush.msra.mxu0 0.0
    %1090 = vmatpush.msra.mxu0 0.0
    %1091 = vmatpush.msra.mxu0 0.0
    %1092 = vmatpush.msra.mxu0 0.0
    %1093 = vmatpush.msra.mxu0 0.0
    %1094 = vmatpush.msra.mxu0 0.0
    %1095 = vmatpush.msra.mxu0 0.0
    %1096 = vmatpush.msra.mxu0 0.0
    %1097 = vmatpush.msra.mxu0 0.0
    %1098 = vmatpush.msra.mxu0 0.0
    %1099 = vmatpush.msra.mxu0 0.0
    %1100 = vmatpush.msra.mxu0 0.0
    %1101 = vmatpush.msra.mxu0 0.0
    %1102 = vmatpush.msra.mxu0 0.0
    %v1103 = vand.u32 %v701, 4294901760
    %1104 = vmatpush.msra.mxu0 %v1103
    %v1105 = vand.u32 %v697, 4294901760
    %1106 = vmatpush.msra.mxu0 %v1105
    %v1107 = vand.u32 %v731, 4294901760
    %1108 = vmatmul.f32.gmra.mxu0 %v1107
    %v1109 = vpop.f32.mrf.mxu0
    %v1110 = vadd.f32 %v1083, %v1109
    %v1111 = vand.u32 %v734, 4294901760
    %1112 = vmatmul.f32.gmra.mxu0 %v1111
    %v1113 = vpop.f32.mrf.mxu0
    %v1114 = vadd.f32 %v1087, %v1113
    %1115 = vdwg.mxu0
    %1116 = vmatpush.msra.mxu0 0.0
    %1117 = vmatpush.msra.mxu0 0.0
    %1118 = vmatpush.msra.mxu0 0.0
    %1119 = vmatpush.msra.mxu0 0.0
    %1120 = vmatpush.msra.mxu0 0.0
    %1121 = vmatpush.msra.mxu0 0.0
    %1122 = vmatpush.msra.mxu0 0.0
    %1123 = vmatpush.msra.mxu0 0.0
    %1124 = vmatpush.msra.mxu0 0.0
    %1125 = vmatpush.msra.mxu0 0.0
    %1126 = vmatpush.msra.mxu0 0.0
    %1127 = vmatpush.msra.mxu0 0.0
    %1128 = vmatpush.msra.mxu0 0.0
    %1129 = vmatpush.msra.mxu0 0.0
    %v1130 = vand.u32 %v709, 4294901760
    %1131 = vmatpush.msra.mxu0 %v1130
    %v1132 = vand.u32 %v705, 4294901760
    %1133 = vmatpush.msra.mxu0 %v1132
    %v1134 = vand.u32 %v731, 4294901760
    %v1135 = vsub.f32 %v731, %v1134
    %v1136 = vand.u32 %v1135, 4294901760
    %v1137 = vsub.f32 %v1135, %v1136
    %v1138 = vand.u32 %v1137, 4294901760
    %1139 = vmatmul.f32.gmra.mxu0 %v1138
    %v1140 = vpop.f32.mrf.mxu0
    %v1141 = vadd.f32 0.0, %v1140
    %v1142 = vand.u32 %v734, 4294901760
    %v1143 = vsub.f32 %v734, %v1142
    %v1144 = vand.u32 %v1143, 4294901760
    %v1145 = vsub.f32 %v1143, %v1144
    %v1146 = vand.u32 %v1145, 4294901760
    %1147 = vmatmul.f32.gmra.mxu0 %v1146
    %v1148 = vpop.f32.mrf.mxu0
    %v1149 = vadd.f32 0.0, %v1148
    %1150 = vdwg.mxu0
    %1151 = vmatpush.msra.mxu0 0.0
    %1152 = vmatpush.msra.mxu0 0.0
    %1153 = vmatpush.msra.mxu0 0.0
    %1154 = vmatpush.msra.mxu0 0.0
    %1155 = vmatpush.msra.mxu0 0.0
    %1156 = vmatpush.msra.mxu0 0.0
    %1157 = vmatpush.msra.mxu0 0.0
    %1158 = vmatpush.msra.mxu0 0.0
    %1159 = vmatpush.msra.mxu0 0.0
    %1160 = vmatpush.msra.mxu0 0.0
    %1161 = vmatpush.msra.mxu0 0.0
    %1162 = vmatpush.msra.mxu0 0.0
    %1163 = vmatpush.msra.mxu0 0.0
    %1164 = vmatpush.msra.mxu0 0.0
    %v1165 = vand.u32 %v709, 4294901760
    %v1166 = vsub.f32 %v709, %v1165
    %v1167 = vand.u32 %v1166, 4294901760
    %v1168 = vsub.f32 %v1166, %v1167
    %v1169 = vand.u32 %v1168, 4294901760
    %1170 = vmatpush.msra.mxu0 %v1169
    %v1171 = vand.u32 %v705, 4294901760
    %v1172 = vsub.f32 %v705, %v1171
    %v1173 = vand.u32 %v1172, 4294901760
    %v1174 = vsub.f32 %v1172, %v1173
    %v1175 = vand.u32 %v1174, 4294901760
    %1176 = vmatpush.msra.mxu0 %v1175
    %v1177 = vand.u32 %v731, 4294901760
    %1178 = vmatmul.f32.gmra.mxu0 %v1177
    %v1179 = vpop.f32.mrf.mxu0
    %v1180 = vadd.f32 %v1141, %v1179
    %v1181 = vand.u32 %v734, 4294901760
    %1182 = vmatmul.f32.gmra.mxu0 %v1181
    %v1183 = vpop.f32.mrf.mxu0
    %v1184 = vadd.f32 %v1149, %v1183
    %1185 = vdwg.mxu0
    %1186 = vmatpush.msra.mxu0 0.0
    %1187 = vmatpush.msra.mxu0 0.0
    %1188 = vmatpush.msra.mxu0 0.0
    %1189 = vmatpush.msra.mxu0 0.0
    %1190 = vmatpush.msra.mxu0 0.0
    %1191 = vmatpush.msra.mxu0 0.0
    %1192 = vmatpush.msra.mxu0 0.0
    %1193 = vmatpush.msra.mxu0 0.0
    %1194 = vmatpush.msra.mxu0 0.0
    %1195 = vmatpush.msra.mxu0 0.0
    %1196 = vmatpush.msra.mxu0 0.0
    %1197 = vmatpush.msra.mxu0 0.0
    %1198 = vmatpush.msra.mxu0 0.0
    %1199 = vmatpush.msra.mxu0 0.0
    %v1200 = vand.u32 %v709, 4294901760
    %v1201 = vsub.f32 %v709, %v1200
    %1202 = vmatpush.msra.mxu0 %v1201
    %v1203 = vand.u32 %v705, 4294901760
    %v1204 = vsub.f32 %v705, %v1203
    %1205 = vmatpush.msra.mxu0 %v1204
    %v1206 = vand.u32 %v731, 4294901760
    %v1207 = vsub.f32 %v731, %v1206
    %1208 = vmatmul.f32.gmra.mxu0 %v1207
    %v1209 = vpop.f32.mrf.mxu0
    %v1210 = vadd.f32 %v1180, %v1209
    %v1211 = vand.u32 %v734, 4294901760
    %v1212 = vsub.f32 %v734, %v1211
    %1213 = vmatmul.f32.gmra.mxu0 %v1212
    %v1214 = vpop.f32.mrf.mxu0
    %v1215 = vadd.f32 %v1184, %v1214
    %1216 = vdwg.mxu0
    %1217 = vmatpush.msra.mxu0 0.0
    %1218 = vmatpush.msra.mxu0 0.0
    %1219 = vmatpush.msra.mxu0 0.0
    %1220 = vmatpush.msra.mxu0 0.0
    %1221 = vmatpush.msra.mxu0 0.0
    %1222 = vmatpush.msra.mxu0 0.0
    %1223 = vmatpush.msra.mxu0 0.0
    %1224 = vmatpush.msra.mxu0 0.0
    %1225 = vmatpush.msra.mxu0 0.0
    %1226 = vmatpush.msra.mxu0 0.0
    %1227 = vmatpush.msra.mxu0 0.0
    %1228 = vmatpush.msra.mxu0 0.0
    %1229 = vmatpush.msra.mxu0 0.0
    %1230 = vmatpush.msra.mxu0 0.0
    %v1231 = vand.u32 %v709, 4294901760
    %1232 = vmatpush.msra.mxu0 %v1231
    %v1233 = vand.u32 %v705, 4294901760
    %1234 = vmatpush.msra.mxu0 %v1233
    %v1235 = vand.u32 %v731, 4294901760
    %v1236 = vsub.f32 %v731, %v1235
    %v1237 = vand.u32 %v1236, 4294901760
    %1238 = vmatmul.f32.gmra.mxu0 %v1237
    %v1239 = vpop.f32.mrf.mxu0
    %v1240 = vadd.f32 %v1210, %v1239
    %v1241 = vand.u32 %v734, 4294901760
    %v1242 = vsub.f32 %v734, %v1241
    %v1243 = vand.u32 %v1242, 4294901760
    %1244 = vmatmul.f32.gmra.mxu0 %v1243
    %v1245 = vpop.f32.mrf.mxu0
    %v1246 = vadd.f32 %v1215, %v1245
    %1247 = vdwg.mxu0
    %1248 = vmatpush.msra.mxu0 0.0
    %1249 = vmatpush.msra.mxu0 0.0
    %1250 = vmatpush.msra.mxu0 0.0
    %1251 = vmatpush.msra.mxu0 0.0
    %1252 = vmatpush.msra.mxu0 0.0
    %1253 = vmatpush.msra.mxu0 0.0
    %1254 = vmatpush.msra.mxu0 0.0
    %1255 = vmatpush.msra.mxu0 0.0
    %1256 = vmatpush.msra.mxu0 0.0
    %1257 = vmatpush.msra.mxu0 0.0
    %1258 = vmatpush.msra.mxu0 0.0
    %1259 = vmatpush.msra.mxu0 0.0
    %1260 = vmatpush.msra.mxu0 0.0
    %1261 = vmatpush.msra.mxu0 0.0
    %v1262 = vand.u32 %v709, 4294901760
    %v1263 = vsub.f32 %v709, %v1262
    %v1264 = vand.u32 %v1263, 4294901760
    %1265 = vmatpush.msra.mxu0 %v1264
    %v1266 = vand.u32 %v705, 4294901760
    %v1267 = vsub.f32 %v705, %v1266
    %v1268 = vand.u32 %v1267, 4294901760
    %1269 = vmatpush.msra.mxu0 %v1268
    %v1270 = vand.u32 %v731, 4294901760
    %1271 = vmatmul.f32.gmra.mxu0 %v1270
    %v1272 = vpop.f32.mrf.mxu0
    %v1273 = vadd.f32 %v1240, %v1272
    %v1274 = vand.u32 %v734, 4294901760
    %1275 = vmatmul.f32.gmra.mxu0 %v1274
    %v1276 = vpop.f32.mrf.mxu0
    %v1277 = vadd.f32 %v1246, %v1276
    %1278 = vdwg.mxu0
    %1279 = vmatpush.msra.mxu0 0.0
    %1280 = vmatpush.msra.mxu0 0.0
    %1281 = vmatpush.msra.mxu0 0.0
    %1282 = vmatpush.msra.mxu0 0.0
    %1283 = vmatpush.msra.mxu0 0.0
    %1284 = vmatpush.msra.mxu0 0.0
    %1285 = vmatpush.msra.mxu0 0.0
    %1286 = vmatpush.msra.mxu0 0.0
    %1287 = vmatpush.msra.mxu0 0.0
    %1288 = vmatpush.msra.mxu0 0.0
    %1289 = vmatpush.msra.mxu0 0.0
    %1290 = vmatpush.msra.mxu0 0.0
    %1291 = vmatpush.msra.mxu0 0.0
    %1292 = vmatpush.msra.mxu0 0.0
    %v1293 = vand.u32 %v709, 4294901760
    %1294 = vmatpush.msra.mxu0 %v1293
    %v1295 = vand.u32 %v705, 4294901760
    %1296 = vmatpush.msra.mxu0 %v1295
    %v1297 = vand.u32 %v731, 4294901760
    %1298 = vmatmul.f32.gmra.mxu0 %v1297
    %v1299 = vpop.f32.mrf.mxu0
    %v1300 = vadd.f32 %v1273, %v1299
    %v1301 = vand.u32 %v734, 4294901760
    %1302 = vmatmul.f32.gmra.mxu0 %v1301
    %v1303 = vpop.f32.mrf.mxu0
    %v1304 = vadd.f32 %v1277, %v1303
    %1305 = vdwg.mxu0
    %1306 = vmatpush.msra.mxu0 0.0
    %1307 = vmatpush.msra.mxu0 0.0
    %1308 = vmatpush.msra.mxu0 0.0
    %1309 = vmatpush.msra.mxu0 0.0
    %1310 = vmatpush.msra.mxu0 0.0
    %1311 = vmatpush.msra.mxu0 0.0
    %1312 = vmatpush.msra.mxu0 0.0
    %1313 = vmatpush.msra.mxu0 0.0
    %1314 = vmatpush.msra.mxu0 0.0
    %1315 = vmatpush.msra.mxu0 0.0
    %1316 = vmatpush.msra.mxu0 0.0
    %1317 = vmatpush.msra.mxu0 0.0
    %1318 = vmatpush.msra.mxu0 0.0
    %1319 = vmatpush.msra.mxu0 0.0
    %v1320 = vand.u32 %v717, 4294901760
    %1321 = vmatpush.msra.mxu0 %v1320
    %v1322 = vand.u32 %v713, 4294901760
    %1323 = vmatpush.msra.mxu0 %v1322
    %v1324 = vand.u32 %v731, 4294901760
    %v1325 = vsub.f32 %v731, %v1324
    %v1326 = vand.u32 %v1325, 4294901760
    %v1327 = vsub.f32 %v1325, %v1326
    %v1328 = vand.u32 %v1327, 4294901760
    %1329 = vmatmul.f32.gmra.mxu0 %v1328
    %v1330 = vpop.f32.mrf.mxu0
    %v1331 = vadd.f32 0.0, %v1330
    %v1332 = vand.u32 %v734, 4294901760
    %v1333 = vsub.f32 %v734, %v1332
    %v1334 = vand.u32 %v1333, 4294901760
    %v1335 = vsub.f32 %v1333, %v1334
    %v1336 = vand.u32 %v1335, 4294901760
    %1337 = vmatmul.f32.gmra.mxu0 %v1336
    %v1338 = vpop.f32.mrf.mxu0
    %v1339 = vadd.f32 0.0, %v1338
    %1340 = vdwg.mxu0
    %1341 = vmatpush.msra.mxu0 0.0
    %1342 = vmatpush.msra.mxu0 0.0
    %1343 = vmatpush.msra.mxu0 0.0
    %1344 = vmatpush.msra.mxu0 0.0
    %1345 = vmatpush.msra.mxu0 0.0
    %1346 = vmatpush.msra.mxu0 0.0
    %1347 = vmatpush.msra.mxu0 0.0
    %1348 = vmatpush.msra.mxu0 0.0
    %1349 = vmatpush.msra.mxu0 0.0
    %1350 = vmatpush.msra.mxu0 0.0
    %1351 = vmatpush.msra.mxu0 0.0
    %1352 = vmatpush.msra.mxu0 0.0
    %1353 = vmatpush.msra.mxu0 0.0
    %1354 = vmatpush.msra.mxu0 0.0
    %v1355 = vand.u32 %v717, 4294901760
    %v1356 = vsub.f32 %v717, %v1355
    %v1357 = vand.u32 %v1356, 4294901760
    %v1358 = vsub.f32 %v1356, %v1357
    %v1359 = vand.u32 %v1358, 4294901760
    %1360 = vmatpush.msra.mxu0 %v1359
    %v1361 = vand.u32 %v713, 4294901760
    %v1362 = vsub.f32 %v713, %v1361
    %v1363 = vand.u32 %v1362, 4294901760
    %v1364 = vsub.f32 %v1362, %v1363
    %v1365 = vand.u32 %v1364, 4294901760
    %1366 = vmatpush.msra.mxu0 %v1365
    %v1367 = vand.u32 %v731, 4294901760
    %1368 = vmatmul.f32.gmra.mxu0 %v1367
    %v1369 = vpop.f32.mrf.mxu0
    %v1370 = vadd.f32 %v1331, %v1369
    %v1371 = vand.u32 %v734, 4294901760
    %1372 = vmatmul.f32.gmra.mxu0 %v1371
    %v1373 = vpop.f32.mrf.mxu0
    %v1374 = vadd.f32 %v1339, %v1373
    %1375 = vdwg.mxu0
    %1376 = vmatpush.msra.mxu0 0.0
    %1377 = vmatpush.msra.mxu0 0.0
    %1378 = vmatpush.msra.mxu0 0.0
    %1379 = vmatpush.msra.mxu0 0.0
    %1380 = vmatpush.msra.mxu0 0.0
    %1381 = vmatpush.msra.mxu0 0.0
    %1382 = vmatpush.msra.mxu0 0.0
    %1383 = vmatpush.msra.mxu0 0.0
    %1384 = vmatpush.msra.mxu0 0.0
    %1385 = vmatpush.msra.mxu0 0.0
    %1386 = vmatpush.msra.mxu0 0.0
    %1387 = vmatpush.msra.mxu0 0.0
    %1388 = vmatpush.msra.mxu0 0.0
    %1389 = vmatpush.msra.mxu0 0.0
    %v1390 = vand.u32 %v717, 4294901760
    %v1391 = vsub.f32 %v717, %v1390
    %1392 = vmatpush.msra.mxu0 %v1391
    %v1393 = vand.u32 %v713, 4294901760
    %v1394 = vsub.f32 %v713, %v1393
    %1395 = vmatpush.msra.mxu0 %v1394
    %v1396 = vand.u32 %v731, 4294901760
    %v1397 = vsub.f32 %v731, %v1396
    %1398 = vmatmul.f32.gmra.mxu0 %v1397
    %v1399 = vpop.f32.mrf.mxu0
    %v1400 = vadd.f32 %v1370, %v1399
    %v1401 = vand.u32 %v734, 4294901760
    %v1402 = vsub.f32 %v734, %v1401
    %1403 = vmatmul.f32.gmra.mxu0 %v1402
    %v1404 = vpop.f32.mrf.mxu0
    %v1405 = vadd.f32 %v1374, %v1404
    %1406 = vdwg.mxu0
    %1407 = vmatpush.msra.mxu0 0.0
    %1408 = vmatpush.msra.mxu0 0.0
    %1409 = vmatpush.msra.mxu0 0.0
    %1410 = vmatpush.msra.mxu0 0.0
    %1411 = vmatpush.msra.mxu0 0.0
    %1412 = vmatpush.msra.mxu0 0.0
    %1413 = vmatpush.msra.mxu0 0.0
    %1414 = vmatpush.msra.mxu0 0.0
    %1415 = vmatpush.msra.mxu0 0.0
    %1416 = vmatpush.msra.mxu0 0.0
    %1417 = vmatpush.msra.mxu0 0.0
    %1418 = vmatpush.msra.mxu0 0.0
    %1419 = vmatpush.msra.mxu0 0.0
    %1420 = vmatpush.msra.mxu0 0.0
    %v1421 = vand.u32 %v717, 4294901760
    %1422 = vmatpush.msra.mxu0 %v1421
    %v1423 = vand.u32 %v713, 4294901760
    %1424 = vmatpush.msra.mxu0 %v1423
    %v1425 = vand.u32 %v731, 4294901760
    %v1426 = vsub.f32 %v731, %v1425
    %v1427 = vand.u32 %v1426, 4294901760
    %1428 = vmatmul.f32.gmra.mxu0 %v1427
    %v1429 = vpop.f32.mrf.mxu0
    %v1430 = vadd.f32 %v1400, %v1429
    %v1431 = vand.u32 %v734, 4294901760
    %v1432 = vsub.f32 %v734, %v1431
    %v1433 = vand.u32 %v1432, 4294901760
    %1434 = vmatmul.f32.gmra.mxu0 %v1433
    %v1435 = vpop.f32.mrf.mxu0
    %v1436 = vadd.f32 %v1405, %v1435
    %1437 = vdwg.mxu0
    %1438 = vmatpush.msra.mxu0 0.0
    %1439 = vmatpush.msra.mxu0 0.0
    %1440 = vmatpush.msra.mxu0 0.0
    %1441 = vmatpush.msra.mxu0 0.0
    %1442 = vmatpush.msra.mxu0 0.0
    %1443 = vmatpush.msra.mxu0 0.0
    %1444 = vmatpush.msra.mxu0 0.0
    %1445 = vmatpush.msra.mxu0 0.0
    %1446 = vmatpush.msra.mxu0 0.0
    %1447 = vmatpush.msra.mxu0 0.0
    %1448 = vmatpush.msra.mxu0 0.0
    %1449 = vmatpush.msra.mxu0 0.0
    %1450 = vmatpush.msra.mxu0 0.0
    %1451 = vmatpush.msra.mxu0 0.0
    %v1452 = vand.u32 %v717, 4294901760
    %v1453 = vsub.f32 %v717, %v1452
    %v1454 = vand.u32 %v1453, 4294901760
    %1455 = vmatpush.msra.mxu0 %v1454
    %v1456 = vand.u32 %v713, 4294901760
    %v1457 = vsub.f32 %v713, %v1456
    %v1458 = vand.u32 %v1457, 4294901760
    %1459 = vmatpush.msra.mxu0 %v1458
    %v1460 = vand.u32 %v731, 4294901760
    %1461 = vmatmul.f32.gmra.mxu0 %v1460
    %v1462 = vpop.f32.mrf.mxu0
    %v1463 = vadd.f32 %v1430, %v1462
    %v1464 = vand.u32 %v734, 4294901760
    %1465 = vmatmul.f32.gmra.mxu0 %v1464
    %v1466 = vpop.f32.mrf.mxu0
    %v1467 = vadd.f32 %v1436, %v1466
    %1468 = vdwg.mxu0
    %1469 = vmatpush.msra.mxu0 0.0
    %1470 = vmatpush.msra.mxu0 0.0
    %1471 = vmatpush.msra.mxu0 0.0
    %1472 = vmatpush.msra.mxu0 0.0
    %1473 = vmatpush.msra.mxu0 0.0
    %1474 = vmatpush.msra.mxu0 0.0
    %1475 = vmatpush.msra.mxu0 0.0
    %1476 = vmatpush.msra.mxu0 0.0
    %1477 = vmatpush.msra.mxu0 0.0
    %1478 = vmatpush.msra.mxu0 0.0
    %1479 = vmatpush.msra.mxu0 0.0
    %1480 = vmatpush.msra.mxu0 0.0
    %1481 = vmatpush.msra.mxu0 0.0
    %1482 = vmatpush.msra.mxu0 0.0
    %v1483 = vand.u32 %v717, 4294901760
    %1484 = vmatpush.msra.mxu0 %v1483
    %v1485 = vand.u32 %v713, 4294901760
    %1486 = vmatpush.msra.mxu0 %v1485
    %v1487 = vand.u32 %v731, 4294901760
    %1488 = vmatmul.f32.gmra.mxu0 %v1487
    %v1489 = vpop.f32.mrf.mxu0
    %v1490 = vadd.f32 %v1463, %v1489
    %v1491 = vand.u32 %v734, 4294901760
    %1492 = vmatmul.f32.gmra.mxu0 %v1491
    %v1493 = vpop.f32.mrf.mxu0
    %v1494 = vadd.f32 %v1467, %v1493
    %1495 = vdwg.mxu0
    %1496 = vmatpush.msra.mxu0 0.0
    %1497 = vmatpush.msra.mxu0 0.0
    %1498 = vmatpush.msra.mxu0 0.0
    %1499 = vmatpush.msra.mxu0 0.0
    %1500 = vmatpush.msra.mxu0 0.0
    %1501 = vmatpush.msra.mxu0 0.0
    %1502 = vmatpush.msra.mxu0 0.0
    %1503 = vmatpush.msra.mxu0 0.0
    %1504 = vmatpush.msra.mxu0 0.0
    %1505 = vmatpush.msra.mxu0 0.0
    %1506 = vmatpush.msra.mxu0 0.0
    %1507 = vmatpush.msra.mxu0 0.0
    %1508 = vmatpush.msra.mxu0 0.0
    %1509 = vmatpush.msra.mxu0 0.0
    %v1510 = vand.u32 %v725, 4294901760
    %1511 = vmatpush.msra.mxu0 %v1510
    %v1512 = vand.u32 %v721, 4294901760
    %1513 = vmatpush.msra.mxu0 %v1512
    %v1514 = vand.u32 %v731, 4294901760
    %v1515 = vsub.f32 %v731, %v1514
    %v1516 = vand.u32 %v1515, 4294901760
    %v1517 = vsub.f32 %v1515, %v1516
    %v1518 = vand.u32 %v1517, 4294901760
    %1519 = vmatmul.f32.gmra.mxu0 %v1518
    %v1520 = vpop.f32.mrf.mxu0
    %v1521 = vadd.f32 0.0, %v1520
    %v1522 = vand.u32 %v734, 4294901760
    %v1523 = vsub.f32 %v734, %v1522
    %v1524 = vand.u32 %v1523, 4294901760
    %v1525 = vsub.f32 %v1523, %v1524
    %v1526 = vand.u32 %v1525, 4294901760
    %1527 = vmatmul.f32.gmra.mxu0 %v1526
    %v1528 = vpop.f32.mrf.mxu0
    %v1529 = vadd.f32 0.0, %v1528
    %1530 = vdwg.mxu0
    %1531 = vmatpush.msra.mxu0 0.0
    %1532 = vmatpush.msra.mxu0 0.0
    %1533 = vmatpush.msra.mxu0 0.0
    %1534 = vmatpush.msra.mxu0 0.0
    %1535 = vmatpush.msra.mxu0 0.0
    %1536 = vmatpush.msra.mxu0 0.0
    %1537 = vmatpush.msra.mxu0 0.0
    %1538 = vmatpush.msra.mxu0 0.0
    %1539 = vmatpush.msra.mxu0 0.0
    %1540 = vmatpush.msra.mxu0 0.0
    %1541 = vmatpush.msra.mxu0 0.0
    %1542 = vmatpush.msra.mxu0 0.0
    %1543 = vmatpush.msra.mxu0 0.0
    %1544 = vmatpush.msra.mxu0 0.0
    %v1545 = vand.u32 %v725, 4294901760
    %v1546 = vsub.f32 %v725, %v1545
    %v1547 = vand.u32 %v1546, 4294901760
    %v1548 = vsub.f32 %v1546, %v1547
    %v1549 = vand.u32 %v1548, 4294901760
    %1550 = vmatpush.msra.mxu0 %v1549
    %v1551 = vand.u32 %v721, 4294901760
    %v1552 = vsub.f32 %v721, %v1551
    %v1553 = vand.u32 %v1552, 4294901760
    %v1554 = vsub.f32 %v1552, %v1553
    %v1555 = vand.u32 %v1554, 4294901760
    %1556 = vmatpush.msra.mxu0 %v1555
    %v1557 = vand.u32 %v731, 4294901760
    %1558 = vmatmul.f32.gmra.mxu0 %v1557
    %v1559 = vpop.f32.mrf.mxu0
    %v1560 = vadd.f32 %v1521, %v1559
    %v1561 = vand.u32 %v734, 4294901760
    %1562 = vmatmul.f32.gmra.mxu0 %v1561
    %v1563 = vpop.f32.mrf.mxu0
    %v1564 = vadd.f32 %v1529, %v1563
    %1565 = vdwg.mxu0
    %1566 = vmatpush.msra.mxu0 0.0
    %1567 = vmatpush.msra.mxu0 0.0
    %1568 = vmatpush.msra.mxu0 0.0
    %1569 = vmatpush.msra.mxu0 0.0
    %1570 = vmatpush.msra.mxu0 0.0
    %1571 = vmatpush.msra.mxu0 0.0
    %1572 = vmatpush.msra.mxu0 0.0
    %1573 = vmatpush.msra.mxu0 0.0
    %1574 = vmatpush.msra.mxu0 0.0
    %1575 = vmatpush.msra.mxu0 0.0
    %1576 = vmatpush.msra.mxu0 0.0
    %1577 = vmatpush.msra.mxu0 0.0
    %1578 = vmatpush.msra.mxu0 0.0
    %1579 = vmatpush.msra.mxu0 0.0
    %v1580 = vand.u32 %v725, 4294901760
    %v1581 = vsub.f32 %v725, %v1580
    %1582 = vmatpush.msra.mxu0 %v1581
    %v1583 = vand.u32 %v721, 4294901760
    %v1584 = vsub.f32 %v721, %v1583
    %1585 = vmatpush.msra.mxu0 %v1584
    %v1586 = vand.u32 %v731, 4294901760
    %v1587 = vsub.f32 %v731, %v1586
    %1588 = vmatmul.f32.gmra.mxu0 %v1587
    %v1589 = vpop.f32.mrf.mxu0
    %v1590 = vadd.f32 %v1560, %v1589
    %v1591 = vand.u32 %v734, 4294901760
    %v1592 = vsub.f32 %v734, %v1591
    %1593 = vmatmul.f32.gmra.mxu0 %v1592
    %v1594 = vpop.f32.mrf.mxu0
    %v1595 = vadd.f32 %v1564, %v1594
    %1596 = vdwg.mxu0
    %1597 = vmatpush.msra.mxu0 0.0
    %1598 = vmatpush.msra.mxu0 0.0
    %1599 = vmatpush.msra.mxu0 0.0
    %1600 = vmatpush.msra.mxu0 0.0
    %1601 = vmatpush.msra.mxu0 0.0
    %1602 = vmatpush.msra.mxu0 0.0
    %1603 = vmatpush.msra.mxu0 0.0
    %1604 = vmatpush.msra.mxu0 0.0
    %1605 = vmatpush.msra.mxu0 0.0
    %1606 = vmatpush.msra.mxu0 0.0
    %1607 = vmatpush.msra.mxu0 0.0
    %1608 = vmatpush.msra.mxu0 0.0
    %1609 = vmatpush.msra.mxu0 0.0
    %1610 = vmatpush.msra.mxu0 0.0
    %v1611 = vand.u32 %v725, 4294901760
    %1612 = vmatpush.msra.mxu0 %v1611
    %v1613 = vand.u32 %v721, 4294901760
    %1614 = vmatpush.msra.mxu0 %v1613
    %v1615 = vand.u32 %v731, 4294901760
    %v1616 = vsub.f32 %v731, %v1615
    %v1617 = vand.u32 %v1616, 4294901760
    %1618 = vmatmul.f32.gmra.mxu0 %v1617
    %v1619 = vpop.f32.mrf.mxu0
    %v1620 = vadd.f32 %v1590, %v1619
    %v1621 = vand.u32 %v734, 4294901760
    %v1622 = vsub.f32 %v734, %v1621
    %v1623 = vand.u32 %v1622, 4294901760
    %1624 = vmatmul.f32.gmra.mxu0 %v1623
    %v1625 = vpop.f32.mrf.mxu0
    %v1626 = vadd.f32 %v1595, %v1625
    %1627 = vdwg.mxu0
    %1628 = vmatpush.msra.mxu0 0.0
    %1629 = vmatpush.msra.mxu0 0.0
    %1630 = vmatpush.msra.mxu0 0.0
    %1631 = vmatpush.msra.mxu0 0.0
    %1632 = vmatpush.msra.mxu0 0.0
    %1633 = vmatpush.msra.mxu0 0.0
    %1634 = vmatpush.msra.mxu0 0.0
    %1635 = vmatpush.msra.mxu0 0.0
    %1636 = vmatpush.msra.mxu0 0.0
    %1637 = vmatpush.msra.mxu0 0.0
    %1638 = vmatpush.msra.mxu0 0.0
    %1639 = vmatpush.msra.mxu0 0.0
    %1640 = vmatpush.msra.mxu0 0.0
    %1641 = vmatpush.msra.mxu0 0.0
    %v1642 = vand.u32 %v725, 4294901760
    %v1643 = vsub.f32 %v725, %v1642
    %v1644 = vand.u32 %v1643, 4294901760
    %1645 = vmatpush.msra.mxu0 %v1644
    %v1646 = vand.u32 %v721, 4294901760
    %v1647 = vsub.f32 %v721, %v1646
    %v1648 = vand.u32 %v1647, 4294901760
    %1649 = vmatpush.msra.mxu0 %v1648
    %v1650 = vand.u32 %v731, 4294901760
    %1651 = vmatmul.f32.gmra.mxu0 %v1650
    %v1652 = vpop.f32.mrf.mxu0
    %v1653 = vadd.f32 %v1620, %v1652
    %v1654 = vand.u32 %v734, 4294901760
    %1655 = vmatmul.f32.gmra.mxu0 %v1654
    %v1656 = vpop.f32.mrf.mxu0
    %v1657 = vadd.f32 %v1626, %v1656
    %1658 = vdwg.mxu0
    %1659 = vmatpush.msra.mxu0 0.0
    %1660 = vmatpush.msra.mxu0 0.0
    %1661 = vmatpush.msra.mxu0 0.0
    %1662 = vmatpush.msra.mxu0 0.0
    %1663 = vmatpush.msra.mxu0 0.0
    %1664 = vmatpush.msra.mxu0 0.0
    %1665 = vmatpush.msra.mxu0 0.0
    %1666 = vmatpush.msra.mxu0 0.0
    %1667 = vmatpush.msra.mxu0 0.0
    %1668 = vmatpush.msra.mxu0 0.0
    %1669 = vmatpush.msra.mxu0 0.0
    %1670 = vmatpush.msra.mxu0 0.0
    %1671 = vmatpush.msra.mxu0 0.0
    %1672 = vmatpush.msra.mxu0 0.0
    %v1673 = vand.u32 %v725, 4294901760
    %1674 = vmatpush.msra.mxu0 %v1673
    %v1675 = vand.u32 %v721, 4294901760
    %1676 = vmatpush.msra.mxu0 %v1675
    %v1677 = vand.u32 %v731, 4294901760
    %1678 = vmatmul.f32.gmra.mxu0 %v1677
    %v1679 = vpop.f32.mrf.mxu0
    %v1680 = vadd.f32 %v1653, %v1679
    %v1681 = vand.u32 %v734, 4294901760
    %1682 = vmatmul.f32.gmra.mxu0 %v1681
    %v1683 = vpop.f32.mrf.mxu0
    %v1684 = vadd.f32 %v1657, %v1683
    %1685 = vdwg.mxu0
    %v1686 = vmul.f32 %v920, %v1110
    %v1687 = vmul.f32 %v924, %v1114
    %v1688 = vmul.f32 %v1686, 2.0
    %v1689 = vmul.f32 %v1687, 2.0
    %v1690 = vadd.f32 %v1688, 0.0001
    %v1691 = vadd.f32 %v1689, 0.0001
    %v1692 = vsub.f32 %v1680, %v1686
    %v1693 = vsub.f32 %v1684, %v1687
    %v1694 = vmul.f32 %v1692, 2.0
    %v1695 = vmul.f32 %v1693, 2.0
    %v1696 = vadd.f32 %v1694, 0.0009
    %v1697 = vadd.f32 %v1695, 0.0009
    %v1698 = vmul.f32 %v1690, %v1696
    %v1699 = vmul.f32 %v1691, %v1697
    %v1700 = vmul.f32 %v920, %v920
    %v1701 = vmul.f32 %v924, %v924
    %v1702 = vmul.f32 %v1110, %v1110
    %v1703 = vmul.f32 %v1114, %v1114
    %v1704 = vadd.f32 %v1700, %v1702
    %v1705 = vadd.f32 %v1701, %v1703
    %v1706 = vadd.f32 %v1704, 0.0001
    %v1707 = vadd.f32 %v1705, 0.0001
    %v1708 = vadd.f32 %v1300, %v1490
    %v1709 = vadd.f32 %v1304, %v1494
    %v1710 = vsub.f32 %v1708, %v1704
    %v1711 = vsub.f32 %v1709, %v1705
    %v1712 = vadd.f32 %v1710, 0.0009
    %v1713 = vadd.f32 %v1711, 0.0009
    %v1714 = vmul.f32 %v1706, %v1712
    %v1715 = vmul.f32 %v1707, %v1713
    %v1716 = vrcp.pop %v1714
    %v1717 = vmul.f32 %v1714, %v1716
    %v1718 = vsub.f32 1.0, %v1717
    %v1719 = vmul.f32 %v1716, %v1718
    %v1720 = vadd.f32 %v1716, %v1719
    %vm1721 = vweird.f32 %v1714
    %vm1722 = vweird.f32 %v1716
    %vm1723 = vmor %vm1721, %vm1722
    %v1724 = vsel %vm1723, %v1716, %v1720
    %v1725 = vand.u32 2147483647, %v1714
    %vm1726 = vcmp.eq.f32.partialorder %v1725, 8.507059e+37
    %v1727 = vand.u32 %v1714, 2147483648
    %v1728 = vor.u32 1.1754944e-38, %v1727
    %v1729 = vsel %vm1726, %v1728, %v1724
    %v1730 = vmul.f32 %v1698, %v1729
    %v1731 = vrcp.pop %v1715
    %v1732 = vmul.f32 %v1715, %v1731
    %v1733 = vsub.f32 1.0, %v1732
    %v1734 = vmul.f32 %v1731, %v1733
    %v1735 = vadd.f32 %v1731, %v1734
    %vm1736 = vweird.f32 %v1715
    %vm1737 = vweird.f32 %v1731
    %vm1738 = vmor %vm1736, %vm1737
    %v1739 = vsel %vm1738, %v1731, %v1735
    %v1740 = vand.u32 2147483647, %v1715
    %vm1741 = vcmp.eq.f32.partialorder %v1740, 8.507059e+37
    %v1742 = vand.u32 %v1715, 2147483648
    %v1743 = vor.u32 1.1754944e-38, %v1742
    %v1744 = vsel %vm1741, %v1743, %v1739
    %v1745 = vmul.f32 %v1699, %v1744
    %1746 = vst [vmem:[#allocation10] sm:$0xff] %v1730
    %1747 = vst [vmem:[#allocation10 + $0x8] sm:$0xff] %v1745
    // Predicated region
    $region34: #{tpu_custom_call.1} parent=1 // pred_check
      _
    $region35: #{tpu_custom_call.1} parent=1 // pred_check_branch
      %1749 = sbr.rel (0) target = $region37
    $region36: #{tpu_custom_call.1} parent=1 // pred_region
      %1751 = vsyncadd [#allocation4], 0
      %s1752 = sshll.u32 [#allocation10], 4
      %s1753 = int_to_ptr.vmem [resolvable:$true] %s1752
      %s1754 = sshll.u32 %s4, 4
      %s1755 = int_to_ptr.hbm [resolvable:$true] %s1754
      %1760 = dma.vmem_to_hbm [thread:$0]  %s1753, 256, %s1755, [#allocation4], 128, 128, 8
    $region37: #{tpu_custom_call.1} parent=1 // pred_fallthru
      _
    // Predicated region
    $region38: #{tpu_custom_call.1} parent=1 // pred_check
      _
    $region39: #{tpu_custom_call.1} parent=1 // pred_check_branch
      %1762 = sbr.rel (0) target = $region41
    $region40: #{tpu_custom_call.1} parent=1 // pred_region
      %1764 = dma.done [#allocation4], 256
    $region41: #{tpu_custom_call.1} parent=1 // pred_fallthru
      _
    %1765 = vsyncpa [#allocation3], 1
    %1766 = vsyncpa [#allocation6], 1
    %1767 = vsyncpa [#allocation9], 1
    %1768 = vsyncpa [#allocation4], 1

</llo_original>
